<compile_context>
chip_gen: v5e
topology: v5e:2x2
jax: 0.10.0
libtpu: 0.0.40
codegen_flags: <defaults>
</compile_context>

<pallas_src>
import jax
import jax.numpy as jnp
from jax.experimental import pallas as pl
from jax.experimental.pallas import tpu as pltpu

DIM_H = 32
HP = 128              # hidden dim zero-padded to one full lane group
NUM_LAYERS = 3
BN_EPS = 1e-5


# --------------------------- kernel: pass A ---------------------------------
# Aggregation (A_hat @ h), optional Linear1, and per-row-tile BN statistics.
def _make_pass_a(apply_w, n_real, tm, n_k):
    last_k = n_k - 1

    def kernel(*refs):
        if apply_w:
            a_ref, h_ref, w_ref, vec_ref, z_ref, stats_ref = refs
        else:
            a_ref, h_ref, vec_ref, z_ref, stats_ref = refs
        i = pl.program_id(0)
        k = pl.program_id(1)

        @pl.when(k == 0)
        def _():
            z_ref[...] = jnp.zeros_like(z_ref)

        # bf16 x bf16 -> f32 accumulate: fast MXU path for the O(N^2) part.
        z_ref[...] += jnp.dot(a_ref[...], h_ref[...],
                              preferred_element_type=jnp.float32)

        @pl.when(k == last_k)
        def _():
            agg = z_ref[...]
            if apply_w:
                z = jnp.dot(agg, w_ref[...],
                            preferred_element_type=jnp.float32)
            else:
                z = agg                      # layer 0: Linear(1,H) was folded
            z = z + vec_ref[0:1, :]          # Linear bias
            z_ref[...] = z
            # BN statistics over real nodes only (padded rows masked out);
            # rows 2..7 of the stats block are never read by the wrapper.
            rows = i * tm + jax.lax.broadcasted_iota(jnp.int32, z.shape, 0)
            zm = jnp.where(rows < n_real, z, 0.0)
            stats_ref[0:1, :] = jnp.sum(zm, axis=0, keepdims=True)
            stats_ref[1:2, :] = jnp.sum(zm * zm, axis=0, keepdims=True)

    return kernel


# --------------------------- kernel: pass B ---------------------------------
# Folded BatchNorm + ReLU + Linear2 + ReLU (+ fused prediction head on the
# last layer, emitted transposed / lane-dense).
def _make_pass_b(with_head, n_real):
    inv_n = 1.0 / float(n_real)

    def kernel(z_ref, stats_ref, w_ref, vec_ref, out_ref):
        z = z_ref[...]                                   # (TM, HP) f32
        mean = stats_ref[0:1, :] * inv_n
        var = stats_ref[1:2, :] * inv_n - mean * mean    # biased variance
        scale = vec_ref[0:1, :] * jax.lax.rsqrt(var + BN_EPS)   # gamma*rsqrt
        shift = vec_ref[1:2, :] - mean * scale                  # beta-mean*sc
        zn = jnp.maximum(z * scale + shift, 0.0)
        h = jnp.maximum(
            jnp.dot(zn, w_ref[0], preferred_element_type=jnp.float32)
            + vec_ref[2:3, :], 0.0)
        if with_head:
            h4 = jnp.maximum(
                jnp.dot(h, w_ref[1], preferred_element_type=jnp.float32)
                + vec_ref[3:4, :], 0.0)
            # Linear(H, 1) contracted over the lane axis -> (8, TM) row slab
            # (row 0 real): lane-dense store, ~128x less output writeback.
            r = jax.lax.dot_general(
                vec_ref[8:16, :], h4, (((1,), (1,)), ((), ())),
                preferred_element_type=jnp.float32)
            out_ref[...] = r + vec_ref[4:5, 0:1]          # + head bias
        else:
            # Next layer's aggregation consumes bf16 activations.
            out_ref[...] = h.astype(out_ref.dtype)

    return kernel


# ------------------------------ call helpers --------------------------------
def _compiler_params(dim_sem, per_step_bytes):
    # Raise the scoped-VMEM limit to the double-buffered working set
    # (defaults: 16 MiB v5e / 32 MiB v6e,v7x); cap below v7x's 64 MiB.
    need = 2 * per_step_bytes + (4 << 20)
    return pltpu.CompilerParams(
        dimension_semantics=dim_sem,
        vmem_limit_bytes=int(min(max(need, 16 << 20), 56 << 20)))


def _run_pass_a(a_bf16, h_bf16, wa_mat, vec_a, n, n_pad, tm, tk):
    n_m, n_k = n_pad // tm, n_pad // tk
    apply_w = wa_mat is not None
    kernel = _make_pass_a(apply_w, n, tm, n_k)

    in_specs = [pl.BlockSpec((tm, tk), lambda i, k: (i, k)),   # A tile (bf16)
                pl.BlockSpec((tk, HP), lambda i, k: (k, 0))]   # h tile (bf16)
    args = [a_bf16, h_bf16]
    if apply_w:
        in_specs.append(pl.BlockSpec((HP, HP), lambda i, k: (0, 0)))  # resident
        args.append(wa_mat)
    in_specs.append(pl.BlockSpec((8, HP), lambda i, k: (0, 0)))       # resident
    args.append(vec_a)

    per_step = (tm * tk * 2 + tk * HP * 2 + HP * HP * 4 + 8 * HP * 4
                + tm * HP * 4 + 8 * HP * 4)
    z, part_stats = pl.pallas_call(
        kernel,
        grid=(n_m, n_k),
        in_specs=in_specs,
        out_specs=(pl.BlockSpec((tm, HP), lambda i, k: (i, 0)),
                   pl.BlockSpec((8, HP), lambda i, k: (i, 0))),
        out_shape=(jax.ShapeDtypeStruct((n_pad, HP), jnp.float32),
                   jax.ShapeDtypeStruct((n_m * 8, HP), jnp.float32)),
        compiler_params=_compiler_params(("parallel", "arbitrary"), per_step),
    )(*args)
    # Tiny cross-tile reduction of the per-tile (sum, sumsq) partials is done
    # outside so the row axis stays "parallel" (megacore) inside the kernel.
    stats = part_stats.reshape(n_m, 8, HP)[:, :2, :].sum(axis=0)
    return z, stats


def _run_pass_b(z, stats, w_stack, vec_b, n, n_pad, tm, with_head):
    n_m = n_pad // tm
    kernel = _make_pass_b(with_head, n)
    nw, nv = w_stack.shape[0], vec_b.shape[0]
    in_specs = [pl.BlockSpec((tm, HP), lambda i: (i, 0)),
                pl.BlockSpec((2, HP), lambda i: (0, 0)),
                pl.BlockSpec((nw, HP, HP), lambda i: (0, 0, 0)),
                pl.BlockSpec((nv, HP), lambda i: (0, 0))]
    if with_head:
        out_shape = jax.ShapeDtypeStruct((8, n_pad), jnp.float32)
        out_specs = pl.BlockSpec((8, tm), lambda i: (0, i))
        out_bytes = 8 * tm * 4
    else:
        out_shape = jax.ShapeDtypeStruct((n_pad, HP), jnp.bfloat16)
        out_specs = pl.BlockSpec((tm, HP), lambda i: (i, 0))
        out_bytes = tm * HP * 2
    per_step = (tm * HP * 4 + 2 * HP * 4 + nw * HP * HP * 4 + nv * HP * 4
                + out_bytes)
    return pl.pallas_call(
        kernel,
        grid=(n_m,),
        in_specs=in_specs,
        out_specs=out_specs,
        out_shape=out_shape,
        compiler_params=_compiler_params(("parallel",), per_step),
    )(z, stats, w_stack, vec_b)


# --------------------------- parameter padding -------------------------------
def _pad_row(v):
    v = jnp.asarray(v, jnp.float32).reshape(-1)
    return jnp.zeros((HP,), jnp.float32).at[:v.shape[0]].set(v)


def _pad_mat(w):
    w = jnp.asarray(w, jnp.float32)
    return jnp.zeros((HP, HP), jnp.float32).at[:w.shape[0], :w.shape[1]].set(w)


# ------------------------------- wrapper ------------------------------------
def gin_forward(x, edge_index, params):
    """x: [N, 1] float32 node features; edge_index: [2, E] int32 (src, dst)."""
    n = x.shape[0]
    n_pad = max(128, ((n + 127) // 128) * 128)
    tm = 256 if (n_pad >= 256 and n_pad % 256 == 0) else 128
    if n_pad >= 512 and n_pad % 512 == 0:
        tk = 512
    elif n_pad >= 256 and n_pad % 256 == 0:
        tk = 256
    else:
        tk = 128

    # Dense aggregation matrix A_hat = A + (1+eps)*I with eps = 0 (GINConv
    # default); messages flow src -> dst.  Built and cast to bf16 in the
    # wrapper (entries are small integers, exact in bf16) so the kernel's DMA
    # stream and VMEM tiles are already half-width.
    adj = jnp.zeros((n, n), jnp.float32).at[edge_index[1], edge_index[0]].add(1.0)
    a_hat = adj + jnp.eye(n, dtype=jnp.float32)
    a_bf16 = (jnp.zeros((n_pad, n_pad), jnp.float32)
              .at[:n, :n].set(a_hat)).astype(jnp.bfloat16)

    idx = 0
    h = None
    for l in range(NUM_LAYERS):
        wa, ba, gamma, beta, wb, bb = params[idx:idx + 6]
        idx += 6
        if l == 0:
            # Linear(1, H) is rank-1: fold it into the node features on the
            # VPU side, (A @ x) @ W == A @ (x * w_row).
            x_pad = jnp.zeros((n_pad, 1), jnp.float32).at[:n].set(x)
            h = (x_pad * _pad_row(wa)[None, :]).astype(jnp.bfloat16)
            wa_mat = None
        else:
            wa_mat = _pad_mat(wa)
        vec_a = jnp.zeros((8, HP), jnp.float32).at[0].set(_pad_row(ba))
        z, stats = _run_pass_a(a_bf16, h, wa_mat, vec_a, n, n_pad, tm, tk)

        if l == NUM_LAYERS - 1:
            wl, bl, wl2, bl2 = params[idx:idx + 4]
            w_stack = jnp.stack([_pad_mat(wb), _pad_mat(wl)])
            vec_b = (jnp.zeros((16, HP), jnp.float32)
                     .at[0].set(_pad_row(gamma))
                     .at[1].set(_pad_row(beta))
                     .at[2].set(_pad_row(bb))
                     .at[3].set(_pad_row(bl))
                     .at[4, 0].set(jnp.asarray(bl2, jnp.float32).reshape(()))
                     .at[8].set(_pad_row(wl2)))
            out_t = _run_pass_b(z, stats, w_stack, vec_b, n, n_pad, tm,
                                with_head=True)
            return out_t[0, :n].reshape(n, 1)

        w_stack = _pad_mat(wb)[None]
        vec_b = (jnp.zeros((8, HP), jnp.float32)
                 .at[0].set(_pad_row(gamma))
                 .at[1].set(_pad_row(beta))
                 .at[2].set(_pad_row(bb)))
        h = _run_pass_b(z, stats, w_stack, vec_b, n, n_pad, tm,
                        with_head=False)


# --------------------------- parameter setup ---------------------------------
def init_linear(key, fan_in, fan_out):
    k_w, k_b = jax.random.split(key)
    bound = 1.0 / (fan_in ** 0.5)
    w = jax.random.uniform(k_w, (fan_in, fan_out), jnp.float32, -bound, bound)
    b = jax.random.uniform(k_b, (1, fan_out), jnp.float32, -bound, bound)
    return w, b


def init_params(key, dim_h, num_layers):
    params = []
    in_dim = 1
    for _ in range(num_layers):
        key, k1, k2 = jax.random.split(key, 3)
        wa, ba = init_linear(k1, in_dim, dim_h)
        gamma = jnp.ones((1, dim_h), jnp.float32)
        beta = jnp.zeros((1, dim_h), jnp.float32)
        wb, bb = init_linear(k2, dim_h, dim_h)
        params += [wa, ba, gamma, beta, wb, bb]
        in_dim = dim_h
    key, k1, k2 = jax.random.split(key, 3)
    wl, bl = init_linear(k1, dim_h, dim_h)
    wl2, bl2 = init_linear(k2, dim_h, 1)
    params += [wl, bl, wl2, bl2]
    return params


# ------------------------- pure-JAX reference --------------------------------
def gin_reference(x, edge_index, params):
    n = x.shape[0]
    adj = jnp.zeros((n, n), jnp.float32).at[edge_index[1], edge_index[0]].add(1.0)
    a_hat = adj + jnp.eye(n, dtype=jnp.float32)
    h = x
    idx = 0
    for _ in range(NUM_LAYERS):
        wa, ba, g, be, wb, bb = params[idx:idx + 6]
        idx += 6
        z = a_hat @ h @ wa + ba
        mean = jnp.mean(z, axis=0, keepdims=True)
        var = jnp.mean(jnp.square(z - mean), axis=0, keepdims=True)
        z = (z - mean) / jnp.sqrt(var + BN_EPS) * g + be
        z = jnp.maximum(z, 0.0)
        h = jnp.maximum(z @ wb + bb, 0.0)
    wl, bl, wl2, bl2 = params[idx:idx + 4]
    h4 = jnp.maximum(h @ wl + bl, 0.0)
    return h4 @ wl2 + bl2


# --------------------------------- main ---------------------------------------
if __name__ == "__main__":
    key = jax.random.PRNGKey(0)
    k_x, k_p = jax.random.split(key)

    N = 16  # nodes in the (single) demo graph
    # Bidirectional ring graph: edge_index[0] = sources, edge_index[1] = targets.
    src = jnp.concatenate([jnp.arange(N), (jnp.arange(N) + 1) % N])
    dst = jnp.concatenate([(jnp.arange(N) + 1) % N, jnp.arange(N)])
    edge_index = jnp.stack([src, dst]).astype(jnp.int32)      # [2, 2N]

    x = jax.random.normal(k_x, (N, 1), jnp.float32)           # [N, 1]
    params = init_params(k_p, DIM_H, NUM_LAYERS)

    out = jax.jit(gin_forward)(x, edge_index, params)
    out = jax.block_until_ready(out)

    ref = gin_reference(x, edge_index, params)
    assert out.shape == (N, 1)
    # bf16 aggregation activations (per perf review) -> slightly looser tol.
    assert jnp.allclose(out, ref, rtol=3e-2, atol=3e-2), "mismatch vs reference"

    print("KERNEL_OK")
</pallas_src>

<mosaic_0001>
module attributes {stable_mosaic.version = 11 : i64} {
  func.func @kernel(%arg0: i32, %arg1: i32, %arg2: memref<128x128xbf16, #tpu.memory_space<vmem>>, %arg3: memref<128x128xbf16, #tpu.memory_space<vmem>>, %arg4: memref<8x128xf32, #tpu.memory_space<vmem>>, %arg5: memref<128x128xf32, #tpu.memory_space<vmem>>, %arg6: memref<8x128xf32, #tpu.memory_space<vmem>>) attributes {dimension_semantics = [#tpu.dimension_semantics<parallel>, #tpu.dimension_semantics<arbitrary>], iteration_bounds = array<i64: 1, 1>, scalar_prefetch = 0 : i64, scratch_operands = 0 : i64, tpu.core_type = #tpu.core_type<tc>, window_params = [{transform_indices = @transform_0, window_bounds = array<i64: 128, 128>}, {transform_indices = @transform_1, window_bounds = array<i64: 128, 128>}, {pipeline_mode = #tpu.pipeline_mode<synchronous>, transform_indices = @transform_2, window_bounds = array<i64: 8, 128>}, {transform_indices = @transform_3, window_bounds = array<i64: 128, 128>}, {transform_indices = @transform_4, window_bounds = array<i64: 8, 128>}]} {
    %c0_i32 = arith.constant 0 : i32
    %0 = arith.cmpi eq, %arg1, %c0_i32 : i32
    %1 = arith.extui %0 : i1 to i32
    %c0_i32_0 = arith.constant 0 : i32
    %2 = arith.cmpi ne, %1, %c0_i32_0 : i32
    scf.if %2 {
      %cst_10 = arith.constant 0.000000e+00 : f32
      %12 = vector.broadcast %cst_10 : f32 to vector<128x128xf32>
      %c0_11 = arith.constant 0 : index
      %c0_12 = arith.constant 0 : index
      %13 = vector.load %arg5[%c0_11, %c0_12] : memref<128x128xf32, #tpu.memory_space<vmem>>, vector<128x128xf32>
      tpu.vector_store %arg5[%c0_11, %c0_12], %12 {strides = array<i32>} : memref<128x128xf32, #tpu.memory_space<vmem>>, vector<128x128xf32>,
    } else {
    }
    %c0 = arith.constant 0 : index
    %c0_1 = arith.constant 0 : index
    %3 = vector.load %arg5[%c0, %c0_1] : memref<128x128xf32, #tpu.memory_space<vmem>>, vector<128x128xf32>
    %c0_2 = arith.constant 0 : index
    %c0_3 = arith.constant 0 : index
    %4 = vector.load %arg2[%c0_2, %c0_3] : memref<128x128xbf16, #tpu.memory_space<vmem>>, vector<128x128xbf16>
    %c0_4 = arith.constant 0 : index
    %c0_5 = arith.constant 0 : index
    %5 = vector.load %arg3[%c0_4, %c0_5] : memref<128x128xbf16, #tpu.memory_space<vmem>>, vector<128x128xbf16>
    %cst = arith.constant dense<0.000000e+00> : vector<128x128xf32>
    %6 = tpu.matmul %4, %5, %cst {dimension_numbers = #tpu.dot_dimension_numbers<[1], [0], [0], [1], [0, 0, 1, 1], [], []>} : vector<128x128xbf16>, vector<128x128xbf16>, vector<128x128xf32> -> vector<128x128xf32>
    %7 = arith.addf %3, %6 : vector<128x128xf32>
    %c0_6 = arith.constant 0 : index
    %c0_7 = arith.constant 0 : index
    %8 = vector.load %arg5[%c0_6, %c0_7] : memref<128x128xf32, #tpu.memory_space<vmem>>, vector<128x128xf32>
    tpu.vector_store %arg5[%c0_6, %c0_7], %7 {strides = array<i32>} : memref<128x128xf32, #tpu.memory_space<vmem>>, vector<128x128xf32>,
    %c0_i32_8 = arith.constant 0 : i32
    %9 = arith.cmpi eq, %arg1, %c0_i32_8 : i32
    %10 = arith.extui %9 : i1 to i32
    %c0_i32_9 = arith.constant 0 : i32
    %11 = arith.cmpi ne, %10, %c0_i32_9 : i32
    scf.if %11 {
      %c0_10 = arith.constant 0 : index
      %c0_11 = arith.constant 0 : index
      %12 = vector.load %arg5[%c0_10, %c0_11] : memref<128x128xf32, #tpu.memory_space<vmem>>, vector<128x128xf32>
      %c0_12 = arith.constant 0 : index
      %c0_13 = arith.constant 0 : index
      %13 = vector.load %arg4[%c0_12, %c0_13] : memref<8x128xf32, #tpu.memory_space<vmem>>, vector<1x128xf32>
      %14 = vector.broadcast %13 : vector<1x128xf32> to vector<128x128xf32>
      %15 = arith.addf %12, %14 : vector<128x128xf32>
      %c0_14 = arith.constant 0 : index
      %c0_15 = arith.constant 0 : index
      %16 = vector.load %arg5[%c0_14, %c0_15] : memref<128x128xf32, #tpu.memory_space<vmem>>, vector<128x128xf32>
      tpu.vector_store %arg5[%c0_14, %c0_15], %15 {strides = array<i32>} : memref<128x128xf32, #tpu.memory_space<vmem>>, vector<128x128xf32>,
      %c128_i32 = arith.constant 128 : i32
      %17 = arith.muli %arg0, %c128_i32 : i32
      %18 = tpu.iota {dimensions = array<i32: 0>} : vector<128x128xi32>
      %19 = vector.broadcast %17 : i32 to vector<128x128xi32>
      %20 = arith.addi %19, %18 : vector<128x128xi32>
      %c16_i32 = arith.constant 16 : i32
      %21 = vector.broadcast %c16_i32 : i32 to vector<128x128xi32>
      %22 = arith.cmpi slt, %20, %21 : vector<128x128xi32>
      %cst_16 = arith.constant 0.000000e+00 : f32
      %23 = vector.broadcast %cst_16 : f32 to vector<128x128xf32>
      %24 = arith.select %22, %15, %23 : vector<128x128xi1>, vector<128x128xf32>
      %cst_17 = arith.constant dense<0.000000e+00> : vector<128xf32>
      %25 = vector.multi_reduction <add>, %24, %cst_17 [0] : vector<128x128xf32> to vector<128xf32>
      %26 = vector.shape_cast %25 : vector<128xf32> to vector<1x128xf32>
      %c0_18 = arith.constant 0 : index
      %c0_19 = arith.constant 0 : index
      %27 = vector.load %arg6[%c0_18, %c0_19] : memref<8x128xf32, #tpu.memory_space<vmem>>, vector<1x128xf32>
      tpu.vector_store %arg6[%c0_18, %c0_19], %26 {strides = array<i32>} : memref<8x128xf32, #tpu.memory_space<vmem>>, vector<1x128xf32>,
      %28 = arith.mulf %24, %24 : vector<128x128xf32>
      %cst_20 = arith.constant dense<0.000000e+00> : vector<128xf32>
      %29 = vector.multi_reduction <add>, %28, %cst_20 [0] : vector<128x128xf32> to vector<128xf32>
      %30 = vector.shape_cast %29 : vector<128xf32> to vector<1x128xf32>
      %c1 = arith.constant 1 : index
      %c0_21 = arith.constant 0 : index
      %31 = vector.load %arg6[%c1, %c0_21] : memref<8x128xf32, #tpu.memory_space<vmem>>, vector<1x128xf32>
      tpu.vector_store %arg6[%c1, %c0_21], %30 {strides = array<i32>} : memref<8x128xf32, #tpu.memory_space<vmem>>, vector<1x128xf32>,
    } else {
    }
    return
  }
  func.func @transform_0(%arg0: i32, %arg1: i32) -> (i32, i32) {
    %c0_i32 = arith.constant 0 : i32
    return %arg0, %arg1 : i32, i32
  }
  func.func @transform_1(%arg0: i32, %arg1: i32) -> (i32, i32) {
    %c0_i32 = arith.constant 0 : i32
    %c0_i32_0 = arith.constant 0 : i32
    return %arg1, %c0_i32 : i32, i32
  }
  func.func @transform_2(%arg0: i32, %arg1: i32) -> (i32, i32) {
    %c0_i32 = arith.constant 0 : i32
    %c0_i32_0 = arith.constant 0 : i32
    %c0_i32_1 = arith.constant 0 : i32
    return %c0_i32, %c0_i32_0 : i32, i32
  }
  func.func @transform_3(%arg0: i32, %arg1: i32) -> (i32, i32) {
    %c0_i32 = arith.constant 0 : i32
    %c0_i32_0 = arith.constant 0 : i32
    return %arg0, %c0_i32 : i32, i32
  }
  func.func @transform_4(%arg0: i32, %arg1: i32) -> (i32, i32) {
    %c0_i32 = arith.constant 0 : i32
    %c0_i32_0 = arith.constant 0 : i32
    return %arg0, %c0_i32 : i32, i32
  }
}

module attributes {stable_mosaic.version = 11 : i64} {
  func.func @kernel(%arg0: i32, %arg1: memref<128x128xf32, #tpu.memory_space<vmem>>, %arg2: memref<2x128xf32, #tpu.memory_space<vmem>>, %arg3: memref<1x128x128xf32, #tpu.memory_space<vmem>>, %arg4: memref<8x128xf32, #tpu.memory_space<vmem>>, %arg5: memref<128x128xbf16, #tpu.memory_space<vmem>>) attributes {dimension_semantics = [#tpu.dimension_semantics<parallel>], iteration_bounds = array<i64: 1>, scalar_prefetch = 0 : i64, scratch_operands = 0 : i64, tpu.core_type = #tpu.core_type<tc>, window_params = [{transform_indices = @transform_0, window_bounds = array<i64: 128, 128>}, {pipeline_mode = #tpu.pipeline_mode<synchronous>, transform_indices = @transform_1, window_bounds = array<i64: 2, 128>}, {pipeline_mode = #tpu.pipeline_mode<synchronous>, transform_indices = @transform_2, window_bounds = array<i64: 1, 128, 128>}, {pipeline_mode = #tpu.pipeline_mode<synchronous>, transform_indices = @transform_3, window_bounds = array<i64: 8, 128>}, {transform_indices = @transform_4, window_bounds = array<i64: 128, 128>}]} {
    %c0 = arith.constant 0 : index
    %c0_0 = arith.constant 0 : index
    %0 = vector.load %arg1[%c0, %c0_0] : memref<128x128xf32, #tpu.memory_space<vmem>>, vector<128x128xf32>
    %c0_1 = arith.constant 0 : index
    %c0_2 = arith.constant 0 : index
    %1 = vector.load %arg2[%c0_1, %c0_2] : memref<2x128xf32, #tpu.memory_space<vmem>>, vector<1x128xf32>
    %cst = arith.constant 6.250000e-02 : f32
    %2 = vector.broadcast %cst : f32 to vector<1x128xf32>
    %3 = arith.mulf %1, %2 : vector<1x128xf32>
    %c1 = arith.constant 1 : index
    %c0_3 = arith.constant 0 : index
    %4 = vector.load %arg2[%c1, %c0_3] : memref<2x128xf32, #tpu.memory_space<vmem>>, vector<1x128xf32>
    %cst_4 = arith.constant 6.250000e-02 : f32
    %5 = vector.broadcast %cst_4 : f32 to vector<1x128xf32>
    %6 = arith.mulf %4, %5 : vector<1x128xf32>
    %7 = arith.mulf %3, %3 : vector<1x128xf32>
    %8 = arith.subf %6, %7 : vector<1x128xf32>
    %c0_5 = arith.constant 0 : index
    %c0_6 = arith.constant 0 : index
    %9 = vector.load %arg4[%c0_5, %c0_6] : memref<8x128xf32, #tpu.memory_space<vmem>>, vector<1x128xf32>
    %cst_7 = arith.constant 9.99999974E-6 : f32
    %10 = vector.broadcast %cst_7 : f32 to vector<1x128xf32>
    %11 = arith.addf %8, %10 : vector<1x128xf32>
    %12 = math.rsqrt %11 : vector<1x128xf32>
    %13 = arith.mulf %9, %12 : vector<1x128xf32>
    %c1_8 = arith.constant 1 : index
    %c0_9 = arith.constant 0 : index
    %14 = vector.load %arg4[%c1_8, %c0_9] : memref<8x128xf32, #tpu.memory_space<vmem>>, vector<1x128xf32>
    %15 = arith.mulf %3, %13 : vector<1x128xf32>
    %16 = arith.subf %14, %15 : vector<1x128xf32>
    %17 = vector.broadcast %13 : vector<1x128xf32> to vector<128x128xf32>
    %18 = arith.mulf %0, %17 : vector<128x128xf32>
    %19 = vector.broadcast %16 : vector<1x128xf32> to vector<128x128xf32>
    %20 = arith.addf %18, %19 : vector<128x128xf32>
    %cst_10 = arith.constant 0.000000e+00 : f32
    %21 = vector.broadcast %cst_10 : f32 to vector<128x128xf32>
    %22 = arith.maximumf %20, %21 : vector<128x128xf32>
    %c0_11 = arith.constant 0 : index
    %c0_12 = arith.constant 0 : index
    %c0_13 = arith.constant 0 : index
    %23 = vector.load %arg3[%c0_11, %c0_12, %c0_13] : memref<1x128x128xf32, #tpu.memory_space<vmem>>, vector<1x128x128xf32>
    %24 = vector.shape_cast %23 : vector<1x128x128xf32> to vector<128x128xf32>
    %cst_14 = arith.constant dense<0.000000e+00> : vector<128x128xf32>
    %25 = tpu.matmul %22, %24, %cst_14 {dimension_numbers = #tpu.dot_dimension_numbers<[1], [0], [0], [1], [0, 0, 1, 1], [], []>} : vector<128x128xf32>, vector<128x128xf32>, vector<128x128xf32> -> vector<128x128xf32>
    %c2 = arith.constant 2 : index
    %c0_15 = arith.constant 0 : index
    %26 = vector.load %arg4[%c2, %c0_15] : memref<8x128xf32, #tpu.memory_space<vmem>>, vector<1x128xf32>
    %27 = vector.broadcast %26 : vector<1x128xf32> to vector<128x128xf32>
    %28 = arith.addf %25, %27 : vector<128x128xf32>
    %cst_16 = arith.constant 0.000000e+00 : f32
    %29 = vector.broadcast %cst_16 : f32 to vector<128x128xf32>
    %30 = arith.maximumf %28, %29 : vector<128x128xf32>
    %31 = arith.truncf %30 : vector<128x128xf32> to vector<128x128xbf16>
    %c0_17 = arith.constant 0 : index
    %c0_18 = arith.constant 0 : index
    %32 = vector.load %arg5[%c0_17, %c0_18] : memref<128x128xbf16, #tpu.memory_space<vmem>>, vector<128x128xbf16>
    tpu.vector_store %arg5[%c0_17, %c0_18], %31 {strides = array<i32>} : memref<128x128xbf16, #tpu.memory_space<vmem>>, vector<128x128xbf16>,
    return
  }
  func.func @transform_0(%arg0: i32) -> (i32, i32) {
    %c0_i32 = arith.constant 0 : i32
    %c0_i32_0 = arith.constant 0 : i32
    return %arg0, %c0_i32 : i32, i32
  }
  func.func @transform_1(%arg0: i32) -> (i32, i32) {
    %c0_i32 = arith.constant 0 : i32
    %c0_i32_0 = arith.constant 0 : i32
    %c0_i32_1 = arith.constant 0 : i32
    return %c0_i32, %c0_i32_0 : i32, i32
  }
  func.func @transform_2(%arg0: i32) -> (i32, i32, i32) {
    %c0_i32 = arith.constant 0 : i32
    %c0_i32_0 = arith.constant 0 : i32
    %c0_i32_1 = arith.constant 0 : i32
    %c0_i32_2 = arith.constant 0 : i32
    return %c0_i32, %c0_i32_0, %c0_i32_1 : i32, i32, i32
  }
  func.func @transform_3(%arg0: i32) -> (i32, i32) {
    %c0_i32 = arith.constant 0 : i32
    %c0_i32_0 = arith.constant 0 : i32
    %c0_i32_1 = arith.constant 0 : i32
    return %c0_i32, %c0_i32_0 : i32, i32
  }
  func.func @transform_4(%arg0: i32) -> (i32, i32) {
    %c0_i32 = arith.constant 0 : i32
    %c0_i32_0 = arith.constant 0 : i32
    return %arg0, %c0_i32 : i32, i32
  }
}

module attributes {stable_mosaic.version = 11 : i64} {
  func.func @kernel(%arg0: i32, %arg1: i32, %arg2: memref<128x128xbf16, #tpu.memory_space<vmem>>, %arg3: memref<128x128xbf16, #tpu.memory_space<vmem>>, %arg4: memref<128x128xf32, #tpu.memory_space<vmem>>, %arg5: memref<8x128xf32, #tpu.memory_space<vmem>>, %arg6: memref<128x128xf32, #tpu.memory_space<vmem>>, %arg7: memref<8x128xf32, #tpu.memory_space<vmem>>) attributes {dimension_semantics = [#tpu.dimension_semantics<parallel>, #tpu.dimension_semantics<arbitrary>], iteration_bounds = array<i64: 1, 1>, scalar_prefetch = 0 : i64, scratch_operands = 0 : i64, tpu.core_type = #tpu.core_type<tc>, window_params = [{transform_indices = @transform_0, window_bounds = array<i64: 128, 128>}, {transform_indices = @transform_1, window_bounds = array<i64: 128, 128>}, {pipeline_mode = #tpu.pipeline_mode<synchronous>, transform_indices = @transform_2, window_bounds = array<i64: 128, 128>}, {pipeline_mode = #tpu.pipeline_mode<synchronous>, transform_indices = @transform_3, window_bounds = array<i64: 8, 128>}, {transform_indices = @transform_4, window_bounds = array<i64: 128, 128>}, {transform_indices = @transform_5, window_bounds = array<i64: 8, 128>}]} {
    %c0_i32 = arith.constant 0 : i32
    %0 = arith.cmpi eq, %arg1, %c0_i32 : i32
    %1 = arith.extui %0 : i1 to i32
    %c0_i32_0 = arith.constant 0 : i32
    %2 = arith.cmpi ne, %1, %c0_i32_0 : i32
    scf.if %2 {
      %cst_10 = arith.constant 0.000000e+00 : f32
      %12 = vector.broadcast %cst_10 : f32 to vector<128x128xf32>
      %c0_11 = arith.constant 0 : index
      %c0_12 = arith.constant 0 : index
      %13 = vector.load %arg6[%c0_11, %c0_12] : memref<128x128xf32, #tpu.memory_space<vmem>>, vector<128x128xf32>
      tpu.vector_store %arg6[%c0_11, %c0_12], %12 {strides = array<i32>} : memref<128x128xf32, #tpu.memory_space<vmem>>, vector<128x128xf32>,
    } else {
    }
    %c0 = arith.constant 0 : index
    %c0_1 = arith.constant 0 : index
    %3 = vector.load %arg6[%c0, %c0_1] : memref<128x128xf32, #tpu.memory_space<vmem>>, vector<128x128xf32>
    %c0_2 = arith.constant 0 : index
    %c0_3 = arith.constant 0 : index
    %4 = vector.load %arg2[%c0_2, %c0_3] : memref<128x128xbf16, #tpu.memory_space<vmem>>, vector<128x128xbf16>
    %c0_4 = arith.constant 0 : index
    %c0_5 = arith.constant 0 : index
    %5 = vector.load %arg3[%c0_4, %c0_5] : memref<128x128xbf16, #tpu.memory_space<vmem>>, vector<128x128xbf16>
    %cst = arith.constant dense<0.000000e+00> : vector<128x128xf32>
    %6 = tpu.matmul %4, %5, %cst {dimension_numbers = #tpu.dot_dimension_numbers<[1], [0], [0], [1], [0, 0, 1, 1], [], []>} : vector<128x128xbf16>, vector<128x128xbf16>, vector<128x128xf32> -> vector<128x128xf32>
    %7 = arith.addf %3, %6 : vector<128x128xf32>
    %c0_6 = arith.constant 0 : index
    %c0_7 = arith.constant 0 : index
    %8 = vector.load %arg6[%c0_6, %c0_7] : memref<128x128xf32, #tpu.memory_space<vmem>>, vector<128x128xf32>
    tpu.vector_store %arg6[%c0_6, %c0_7], %7 {strides = array<i32>} : memref<128x128xf32, #tpu.memory_space<vmem>>, vector<128x128xf32>,
    %c0_i32_8 = arith.constant 0 : i32
    %9 = arith.cmpi eq, %arg1, %c0_i32_8 : i32
    %10 = arith.extui %9 : i1 to i32
    %c0_i32_9 = arith.constant 0 : i32
    %11 = arith.cmpi ne, %10, %c0_i32_9 : i32
    scf.if %11 {
      %c0_10 = arith.constant 0 : index
      %c0_11 = arith.constant 0 : index
      %12 = vector.load %arg6[%c0_10, %c0_11] : memref<128x128xf32, #tpu.memory_space<vmem>>, vector<128x128xf32>
      %c0_12 = arith.constant 0 : index
      %c0_13 = arith.constant 0 : index
      %13 = vector.load %arg4[%c0_12, %c0_13] : memref<128x128xf32, #tpu.memory_space<vmem>>, vector<128x128xf32>
      %cst_14 = arith.constant dense<0.000000e+00> : vector<128x128xf32>
      %14 = tpu.matmul %12, %13, %cst_14 {dimension_numbers = #tpu.dot_dimension_numbers<[1], [0], [0], [1], [0, 0, 1, 1], [], []>} : vector<128x128xf32>, vector<128x128xf32>, vector<128x128xf32> -> vector<128x128xf32>
      %c0_15 = arith.constant 0 : index
      %c0_16 = arith.constant 0 : index
      %15 = vector.load %arg5[%c0_15, %c0_16] : memref<8x128xf32, #tpu.memory_space<vmem>>, vector<1x128xf32>
      %16 = vector.broadcast %15 : vector<1x128xf32> to vector<128x128xf32>
      %17 = arith.addf %14, %16 : vector<128x128xf32>
      %c0_17 = arith.constant 0 : index
      %c0_18 = arith.constant 0 : index
      %18 = vector.load %arg6[%c0_17, %c0_18] : memref<128x128xf32, #tpu.memory_space<vmem>>, vector<128x128xf32>
      tpu.vector_store %arg6[%c0_17, %c0_18], %17 {strides = array<i32>} : memref<128x128xf32, #tpu.memory_space<vmem>>, vector<128x128xf32>,
      %c128_i32 = arith.constant 128 : i32
      %19 = arith.muli %arg0, %c128_i32 : i32
      %20 = tpu.iota {dimensions = array<i32: 0>} : vector<128x128xi32>
      %21 = vector.broadcast %19 : i32 to vector<128x128xi32>
      %22 = arith.addi %21, %20 : vector<128x128xi32>
      %c16_i32 = arith.constant 16 : i32
      %23 = vector.broadcast %c16_i32 : i32 to vector<128x128xi32>
      %24 = arith.cmpi slt, %22, %23 : vector<128x128xi32>
      %cst_19 = arith.constant 0.000000e+00 : f32
      %25 = vector.broadcast %cst_19 : f32 to vector<128x128xf32>
      %26 = arith.select %24, %17, %25 : vector<128x128xi1>, vector<128x128xf32>
      %cst_20 = arith.constant dense<0.000000e+00> : vector<128xf32>
      %27 = vector.multi_reduction <add>, %26, %cst_20 [0] : vector<128x128xf32> to vector<128xf32>
      %28 = vector.shape_cast %27 : vector<128xf32> to vector<1x128xf32>
      %c0_21 = arith.constant 0 : index
      %c0_22 = arith.constant 0 : index
      %29 = vector.load %arg7[%c0_21, %c0_22] : memref<8x128xf32, #tpu.memory_space<vmem>>, vector<1x128xf32>
      tpu.vector_store %arg7[%c0_21, %c0_22], %28 {strides = array<i32>} : memref<8x128xf32, #tpu.memory_space<vmem>>, vector<1x128xf32>,
      %30 = arith.mulf %26, %26 : vector<128x128xf32>
      %cst_23 = arith.constant dense<0.000000e+00> : vector<128xf32>
      %31 = vector.multi_reduction <add>, %30, %cst_23 [0] : vector<128x128xf32> to vector<128xf32>
      %32 = vector.shape_cast %31 : vector<128xf32> to vector<1x128xf32>
      %c1 = arith.constant 1 : index
      %c0_24 = arith.constant 0 : index
      %33 = vector.load %arg7[%c1, %c0_24] : memref<8x128xf32, #tpu.memory_space<vmem>>, vector<1x128xf32>
      tpu.vector_store %arg7[%c1, %c0_24], %32 {strides = array<i32>} : memref<8x128xf32, #tpu.memory_space<vmem>>, vector<1x128xf32>,
    } else {
    }
    return
  }
  func.func @transform_0(%arg0: i32, %arg1: i32) -> (i32, i32) {
    %c0_i32 = arith.constant 0 : i32
    return %arg0, %arg1 : i32, i32
  }
  func.func @transform_1(%arg0: i32, %arg1: i32) -> (i32, i32) {
    %c0_i32 = arith.constant 0 : i32
    %c0_i32_0 = arith.constant 0 : i32
    return %arg1, %c0_i32 : i32, i32
  }
  func.func @transform_2(%arg0: i32, %arg1: i32) -> (i32, i32) {
    %c0_i32 = arith.constant 0 : i32
    %c0_i32_0 = arith.constant 0 : i32
    %c0_i32_1 = arith.constant 0 : i32
    return %c0_i32, %c0_i32_0 : i32, i32
  }
  func.func @transform_3(%arg0: i32, %arg1: i32) -> (i32, i32) {
    %c0_i32 = arith.constant 0 : i32
    %c0_i32_0 = arith.constant 0 : i32
    %c0_i32_1 = arith.constant 0 : i32
    return %c0_i32, %c0_i32_0 : i32, i32
  }
  func.func @transform_4(%arg0: i32, %arg1: i32) -> (i32, i32) {
    %c0_i32 = arith.constant 0 : i32
    %c0_i32_0 = arith.constant 0 : i32
    return %arg0, %c0_i32 : i32, i32
  }
  func.func @transform_5(%arg0: i32, %arg1: i32) -> (i32, i32) {
    %c0_i32 = arith.constant 0 : i32
    %c0_i32_0 = arith.constant 0 : i32
    return %arg0, %c0_i32 : i32, i32
  }
}

module attributes {stable_mosaic.version = 11 : i64} {
  func.func @kernel(%arg0: i32, %arg1: memref<128x128xf32, #tpu.memory_space<vmem>>, %arg2: memref<2x128xf32, #tpu.memory_space<vmem>>, %arg3: memref<2x128x128xf32, #tpu.memory_space<vmem>>, %arg4: memref<16x128xf32, #tpu.memory_space<vmem>>, %arg5: memref<8x128xf32, #tpu.memory_space<vmem>>) attributes {dimension_semantics = [#tpu.dimension_semantics<parallel>], iteration_bounds = array<i64: 1>, scalar_prefetch = 0 : i64, scratch_operands = 0 : i64, tpu.core_type = #tpu.core_type<tc>, window_params = [{transform_indices = @transform_0, window_bounds = array<i64: 128, 128>}, {pipeline_mode = #tpu.pipeline_mode<synchronous>, transform_indices = @transform_1, window_bounds = array<i64: 2, 128>}, {pipeline_mode = #tpu.pipeline_mode<synchronous>, transform_indices = @transform_2, window_bounds = array<i64: 2, 128, 128>}, {pipeline_mode = #tpu.pipeline_mode<synchronous>, transform_indices = @transform_3, window_bounds = array<i64: 16, 128>}, {transform_indices = @transform_4, window_bounds = array<i64: 8, 128>}]} {
    %c0 = arith.constant 0 : index
    %c0_0 = arith.constant 0 : index
    %0 = vector.load %arg1[%c0, %c0_0] : memref<128x128xf32, #tpu.memory_space<vmem>>, vector<128x128xf32>
    %c0_1 = arith.constant 0 : index
    %c0_2 = arith.constant 0 : index
    %1 = vector.load %arg2[%c0_1, %c0_2] : memref<2x128xf32, #tpu.memory_space<vmem>>, vector<1x128xf32>
    %cst = arith.constant 6.250000e-02 : f32
    %2 = vector.broadcast %cst : f32 to vector<1x128xf32>
    %3 = arith.mulf %1, %2 : vector<1x128xf32>
    %c1 = arith.constant 1 : index
    %c0_3 = arith.constant 0 : index
    %4 = vector.load %arg2[%c1, %c0_3] : memref<2x128xf32, #tpu.memory_space<vmem>>, vector<1x128xf32>
    %cst_4 = arith.constant 6.250000e-02 : f32
    %5 = vector.broadcast %cst_4 : f32 to vector<1x128xf32>
    %6 = arith.mulf %4, %5 : vector<1x128xf32>
    %7 = arith.mulf %3, %3 : vector<1x128xf32>
    %8 = arith.subf %6, %7 : vector<1x128xf32>
    %c0_5 = arith.constant 0 : index
    %c0_6 = arith.constant 0 : index
    %9 = vector.load %arg4[%c0_5, %c0_6] : memref<16x128xf32, #tpu.memory_space<vmem>>, vector<1x128xf32>
    %cst_7 = arith.constant 9.99999974E-6 : f32
    %10 = vector.broadcast %cst_7 : f32 to vector<1x128xf32>
    %11 = arith.addf %8, %10 : vector<1x128xf32>
    %12 = math.rsqrt %11 : vector<1x128xf32>
    %13 = arith.mulf %9, %12 : vector<1x128xf32>
    %c1_8 = arith.constant 1 : index
    %c0_9 = arith.constant 0 : index
    %14 = vector.load %arg4[%c1_8, %c0_9] : memref<16x128xf32, #tpu.memory_space<vmem>>, vector<1x128xf32>
    %15 = arith.mulf %3, %13 : vector<1x128xf32>
    %16 = arith.subf %14, %15 : vector<1x128xf32>
    %17 = vector.broadcast %13 : vector<1x128xf32> to vector<128x128xf32>
    %18 = arith.mulf %0, %17 : vector<128x128xf32>
    %19 = vector.broadcast %16 : vector<1x128xf32> to vector<128x128xf32>
    %20 = arith.addf %18, %19 : vector<128x128xf32>
    %cst_10 = arith.constant 0.000000e+00 : f32
    %21 = vector.broadcast %cst_10 : f32 to vector<128x128xf32>
    %22 = arith.maximumf %20, %21 : vector<128x128xf32>
    %c0_11 = arith.constant 0 : index
    %c0_12 = arith.constant 0 : index
    %c0_13 = arith.constant 0 : index
    %23 = vector.load %arg3[%c0_11, %c0_12, %c0_13] : memref<2x128x128xf32, #tpu.memory_space<vmem>>, vector<1x128x128xf32>
    %24 = vector.shape_cast %23 : vector<1x128x128xf32> to vector<128x128xf32>
    %cst_14 = arith.constant dense<0.000000e+00> : vector<128x128xf32>
    %25 = tpu.matmul %22, %24, %cst_14 {dimension_numbers = #tpu.dot_dimension_numbers<[1], [0], [0], [1], [0, 0, 1, 1], [], []>} : vector<128x128xf32>, vector<128x128xf32>, vector<128x128xf32> -> vector<128x128xf32>
    %c2 = arith.constant 2 : index
    %c0_15 = arith.constant 0 : index
    %26 = vector.load %arg4[%c2, %c0_15] : memref<16x128xf32, #tpu.memory_space<vmem>>, vector<1x128xf32>
    %27 = vector.broadcast %26 : vector<1x128xf32> to vector<128x128xf32>
    %28 = arith.addf %25, %27 : vector<128x128xf32>
    %cst_16 = arith.constant 0.000000e+00 : f32
    %29 = vector.broadcast %cst_16 : f32 to vector<128x128xf32>
    %30 = arith.maximumf %28, %29 : vector<128x128xf32>
    %c1_17 = arith.constant 1 : index
    %c0_18 = arith.constant 0 : index
    %c0_19 = arith.constant 0 : index
    %31 = vector.load %arg3[%c1_17, %c0_18, %c0_19] : memref<2x128x128xf32, #tpu.memory_space<vmem>>, vector<1x128x128xf32>
    %32 = vector.shape_cast %31 : vector<1x128x128xf32> to vector<128x128xf32>
    %cst_20 = arith.constant dense<0.000000e+00> : vector<128x128xf32>
    %33 = tpu.matmul %30, %32, %cst_20 {dimension_numbers = #tpu.dot_dimension_numbers<[1], [0], [0], [1], [0, 0, 1, 1], [], []>} : vector<128x128xf32>, vector<128x128xf32>, vector<128x128xf32> -> vector<128x128xf32>
    %c3 = arith.constant 3 : index
    %c0_21 = arith.constant 0 : index
    %34 = vector.load %arg4[%c3, %c0_21] : memref<16x128xf32, #tpu.memory_space<vmem>>, vector<1x128xf32>
    %35 = vector.broadcast %34 : vector<1x128xf32> to vector<128x128xf32>
    %36 = arith.addf %33, %35 : vector<128x128xf32>
    %cst_22 = arith.constant 0.000000e+00 : f32
    %37 = vector.broadcast %cst_22 : f32 to vector<128x128xf32>
    %38 = arith.maximumf %36, %37 : vector<128x128xf32>
    %c8 = arith.constant 8 : index
    %c0_23 = arith.constant 0 : index
    %39 = vector.load %arg4[%c8, %c0_23] : memref<16x128xf32, #tpu.memory_space<vmem>>, vector<8x128xf32>
    %cst_24 = arith.constant dense<0.000000e+00> : vector<8x128xf32>
    %40 = tpu.matmul %39, %38, %cst_24 {dimension_numbers = #tpu.dot_dimension_numbers<[1], [1], [0], [0], [0, 0, 1, 0], [], []>} : vector<8x128xf32>, vector<128x128xf32>, vector<8x128xf32> -> vector<8x128xf32>
    %c4 = arith.constant 4 : index
    %c0_25 = arith.constant 0 : index
    %41 = vector.load %arg4[%c4, %c0_25] : memref<16x128xf32, #tpu.memory_space<vmem>>, vector<1x1xf32>
    %42 = vector.broadcast %41 : vector<1x1xf32> to vector<8x128xf32>
    %43 = arith.addf %40, %42 : vector<8x128xf32>
    %c0_26 = arith.constant 0 : index
    %c0_27 = arith.constant 0 : index
    %44 = vector.load %arg5[%c0_26, %c0_27] : memref<8x128xf32, #tpu.memory_space<vmem>>, vector<8x128xf32>
    tpu.vector_store %arg5[%c0_26, %c0_27], %43 {strides = array<i32>} : memref<8x128xf32, #tpu.memory_space<vmem>>, vector<8x128xf32>,
    return
  }
  func.func @transform_0(%arg0: i32) -> (i32, i32) {
    %c0_i32 = arith.constant 0 : i32
    %c0_i32_0 = arith.constant 0 : i32
    return %arg0, %c0_i32 : i32, i32
  }
  func.func @transform_1(%arg0: i32) -> (i32, i32) {
    %c0_i32 = arith.constant 0 : i32
    %c0_i32_0 = arith.constant 0 : i32
    %c0_i32_1 = arith.constant 0 : i32
    return %c0_i32, %c0_i32_0 : i32, i32
  }
  func.func @transform_2(%arg0: i32) -> (i32, i32, i32) {
    %c0_i32 = arith.constant 0 : i32
    %c0_i32_0 = arith.constant 0 : i32
    %c0_i32_1 = arith.constant 0 : i32
    %c0_i32_2 = arith.constant 0 : i32
    return %c0_i32, %c0_i32_0, %c0_i32_1 : i32, i32, i32
  }
  func.func @transform_3(%arg0: i32) -> (i32, i32) {
    %c0_i32 = arith.constant 0 : i32
    %c0_i32_0 = arith.constant 0 : i32
    %c0_i32_1 = arith.constant 0 : i32
    return %c0_i32, %c0_i32_0 : i32, i32
  }
  func.func @transform_4(%arg0: i32) -> (i32, i32) {
    %c0_i32 = arith.constant 0 : i32
    %c0_i32_0 = arith.constant 0 : i32
    return %c0_i32, %arg0 : i32, i32
  }
}

</mosaic_0001>

<llo_original>
// kernel: gin_forward.7
$region0: #{gin_forward.7}
  #allocation0 [shape = 'u32[]', space=smem, size = 0x4, offset = 0x4, fixed_abs, tag = 'smem constant byte address 0x4 - core index']
  #allocation1 [shape = 'u32[72,128]{1,0:T(1,128)}', space=vmem, size = 0x9000, scoped, tag = 'internal scratch']
  %s0 = inlined_call_operand.vmem [shape: f32[128,128], index: 0, kind: input, shape index: {}]
  %s1 = inlined_call_operand.vmem [shape: f32[2,128], index: 1, kind: input, shape index: {}]
  %s2 = inlined_call_operand.vmem [shape: f32[1,128,128], index: 2, kind: input, shape index: {}]
  %s3 = inlined_call_operand.vmem [shape: f32[8,128], index: 3, kind: input, shape index: {}]
  %s4 = inlined_call_operand.vmem [shape: bf16[128,128], index: 4, kind: output, shape index: {}]
  %s5 = sld [smem:[#allocation0]]
  $region26: #{gin_forward.7} parent=0
    _
  %s7 = ssub.s32 1, %s5
  %s8 = scalar_select 0, %s7, %s5
  // Predicated region
  $region2: #{gin_forward.7} parent=0 // pred_check
    _
  $region3: #{gin_forward.7} parent=0 // pred_check_branch
    %10 = sbr.rel (0) target = $region5
  $region4: #{gin_forward.7} parent=0 // pred_region
    _
  $region5: #{gin_forward.7} parent=0 // pred_fallthru
    _
  // Predicated region
  $region6: #{gin_forward.7} parent=0 // pred_check
    _
  $region7: #{gin_forward.7} parent=0 // pred_check_branch
    %12 = sbr.rel (0) target = $region9
  $region8: #{gin_forward.7} parent=0 // pred_region
    _
  $region9: #{gin_forward.7} parent=0 // pred_fallthru
    _
  // Predicated region
  $region10: #{gin_forward.7} parent=0 // pred_check
    _
  $region11: #{gin_forward.7} parent=0 // pred_check_branch
    %14 = sbr.rel (0) target = $region13
  $region12: #{gin_forward.7} parent=0 // pred_region
    _
  $region13: #{gin_forward.7} parent=0 // pred_fallthru
    _
  // Predicated region
  $region14: #{gin_forward.7} parent=0 // pred_check
    _
  $region15: #{gin_forward.7} parent=0 // pred_check_branch
    %16 = sbr.rel (0) target = $region17
  $region16: #{gin_forward.7} parent=0 // pred_region
    _
  $region17: #{gin_forward.7} parent=0 // pred_fallthru
    _
  %v17 = vld [vmem:[%s0] sm:$0xff]
  %v18 = vld [vmem:[%s0 + $0x8] sm:$0xff]
  %v19 = vld [vmem:[%s0 + $0x10] sm:$0xff]
  %v20 = vld [vmem:[%s0 + $0x18] sm:$0xff]
  %v21 = vld [vmem:[%s0 + $0x20] sm:$0xff]
  %v22 = vld [vmem:[%s0 + $0x28] sm:$0xff]
  %v23 = vld [vmem:[%s0 + $0x30] sm:$0xff]
  %v24 = vld [vmem:[%s0 + $0x38] sm:$0xff]
  %v25 = vld [vmem:[%s0 + $0x40] sm:$0xff]
  %v26 = vld [vmem:[%s0 + $0x48] sm:$0xff]
  %v27 = vld [vmem:[%s0 + $0x50] sm:$0xff]
  %v28 = vld [vmem:[%s0 + $0x58] sm:$0xff]
  %v29 = vld [vmem:[%s0 + $0x60] sm:$0xff]
  %v30 = vld [vmem:[%s0 + $0x68] sm:$0xff]
  %v31 = vld [vmem:[%s0 + $0x70] sm:$0xff]
  %v32 = vld [vmem:[%s0 + $0x78] sm:$0xff]
  %v33 = vld [vmem:[%s1] sm:$0x1]
  %v34 = vmul.f32 %v33, 0.0625
  %v35 = vld [vmem:[%s1 + $0x1] sm:$0x1]
  %v36 = vmul.f32 %v35, 0.0625
  %v37 = vmul.f32 %v34, %v34
  %v38 = vsub.f32 %v36, %v37
  %v39 = vld [vmem:[%s3] sm:$0x1]
  %v40 = vadd.f32 %v38, 1e-05
  %v41 = vrsqrt.pop %v40
  %v42 = vmul.f32 %v41, %v40
  %v43 = vmul.f32 %v42, %v41
  %v44 = vmul.f32 0.5, %v43
  %v45 = vsub.f32 1.5, %v44
  %v46 = vmul.f32 %v41, %v45
  %vm47 = vweird.f32 %v40
  %vm48 = vweird.f32 %v41
  %vm49 = vmor %vm47, %vm48
  %v50 = vsel %vm49, %v41, %v46
  %v51 = vmul.f32 %v39, %v50
  %v52 = vld [vmem:[%s3 + $0x1] sm:$0x1]
  %v53 = vmul.f32 %v34, %v51
  %v54 = vsub.f32 %v52, %v53
  %v55 = vperm.slane %v51, 0
  %v56 = vmul.f32 %v17, %v55
  %v57 = vmul.f32 %v18, %v55
  %v58 = vmul.f32 %v19, %v55
  %v59 = vmul.f32 %v20, %v55
  %v60 = vmul.f32 %v21, %v55
  %v61 = vmul.f32 %v22, %v55
  %v62 = vmul.f32 %v23, %v55
  %v63 = vmul.f32 %v24, %v55
  %v64 = vmul.f32 %v25, %v55
  %v65 = vmul.f32 %v26, %v55
  %v66 = vmul.f32 %v27, %v55
  %v67 = vmul.f32 %v28, %v55
  %v68 = vmul.f32 %v29, %v55
  %v69 = vmul.f32 %v30, %v55
  %v70 = vmul.f32 %v31, %v55
  %v71 = vmul.f32 %v32, %v55
  %v72 = vperm.slane %v54, 0
  %v73 = vadd.f32 %v56, %v72
  %v74 = vadd.f32 %v57, %v72
  %v75 = vadd.f32 %v58, %v72
  %v76 = vadd.f32 %v59, %v72
  %v77 = vadd.f32 %v60, %v72
  %v78 = vadd.f32 %v61, %v72
  %v79 = vadd.f32 %v62, %v72
  %v80 = vadd.f32 %v63, %v72
  %v81 = vadd.f32 %v64, %v72
  %v82 = vadd.f32 %v65, %v72
  %v83 = vadd.f32 %v66, %v72
  %v84 = vadd.f32 %v67, %v72
  %v85 = vadd.f32 %v68, %v72
  %v86 = vadd.f32 %v69, %v72
  %v87 = vadd.f32 %v70, %v72
  %v88 = vadd.f32 %v71, %v72
  %v89 = vmax.f32 %v73, 0.0
  %v90 = vmax.f32 %v74, 0.0
  %v91 = vmax.f32 %v75, 0.0
  %v92 = vmax.f32 %v76, 0.0
  %v93 = vmax.f32 %v77, 0.0
  %v94 = vmax.f32 %v78, 0.0
  %v95 = vmax.f32 %v79, 0.0
  %v96 = vmax.f32 %v80, 0.0
  %v97 = vmax.f32 %v81, 0.0
  %v98 = vmax.f32 %v82, 0.0
  %v99 = vmax.f32 %v83, 0.0
  %v100 = vmax.f32 %v84, 0.0
  %v101 = vmax.f32 %v85, 0.0
  %v102 = vmax.f32 %v86, 0.0
  %v103 = vmax.f32 %v87, 0.0
  %v104 = vmax.f32 %v88, 0.0
  %v105 = vld [vmem:[%s2] sm:$0xff]
  %v106 = vld [vmem:[%s2 + $0x8] sm:$0xff]
  %v107 = vld [vmem:[%s2 + $0x10] sm:$0xff]
  %v108 = vld [vmem:[%s2 + $0x18] sm:$0xff]
  %v109 = vld [vmem:[%s2 + $0x20] sm:$0xff]
  %v110 = vld [vmem:[%s2 + $0x28] sm:$0xff]
  %v111 = vld [vmem:[%s2 + $0x30] sm:$0xff]
  %v112 = vld [vmem:[%s2 + $0x38] sm:$0xff]
  %v113 = vld [vmem:[%s2 + $0x40] sm:$0xff]
  %v114 = vld [vmem:[%s2 + $0x48] sm:$0xff]
  %v115 = vld [vmem:[%s2 + $0x50] sm:$0xff]
  %v116 = vld [vmem:[%s2 + $0x58] sm:$0xff]
  %v117 = vld [vmem:[%s2 + $0x60] sm:$0xff]
  %v118 = vld [vmem:[%s2 + $0x68] sm:$0xff]
  %v119 = vld [vmem:[%s2 + $0x70] sm:$0xff]
  %v120 = vld [vmem:[%s2 + $0x78] sm:$0xff]
  %v121 = vld [vmem:[%s3 + $0x2] sm:$0x1]
  %v122 = vperm.slane %v121, 0
  %123 = vmatpush.msra.mxu0 %v120
  %124 = vmatpush.msra.mxu0 %v119
  %125 = vmatpush.msra.mxu0 %v118
  %126 = vmatpush.msra.mxu0 %v117
  %127 = vmatpush.msra.mxu0 %v116
  %128 = vmatpush.msra.mxu0 %v115
  %129 = vmatpush.msra.mxu0 %v114
  %130 = vmatpush.msra.mxu0 %v113
  %131 = vmatpush.msra.mxu0 %v112
  %132 = vmatpush.msra.mxu0 %v111
  %133 = vmatpush.msra.mxu0 %v110
  %134 = vmatpush.msra.mxu0 %v109
  %135 = vmatpush.msra.mxu0 %v108
  %136 = vmatpush.msra.mxu0 %v107
  %137 = vmatpush.msra.mxu0 %v106
  %138 = vmatpush.msra.mxu0 %v105
  %139 = vmatmul.f32.gmra.mxu0 %v89
  %v140 = vpop.f32.mrf.mxu0
  %v141 = vadd.f32 %v122, %v140
  %142 = vmatmul.f32.gmra.mxu0 %v90
  %v143 = vpop.f32.mrf.mxu0
  %v144 = vadd.f32 %v122, %v143
  %145 = vmatmul.f32.gmra.mxu0 %v91
  %v146 = vpop.f32.mrf.mxu0
  %v147 = vadd.f32 %v122, %v146
  %148 = vmatmul.f32.gmra.mxu0 %v92
  %v149 = vpop.f32.mrf.mxu0
  %v150 = vadd.f32 %v122, %v149
  %151 = vmatmul.f32.gmra.mxu0 %v93
  %v152 = vpop.f32.mrf.mxu0
  %v153 = vadd.f32 %v122, %v152
  %154 = vmatmul.f32.gmra.mxu0 %v94
  %v155 = vpop.f32.mrf.mxu0
  %v156 = vadd.f32 %v122, %v155
  %157 = vmatmul.f32.gmra.mxu0 %v95
  %v158 = vpop.f32.mrf.mxu0
  %v159 = vadd.f32 %v122, %v158
  %160 = vmatmul.f32.gmra.mxu0 %v96
  %v161 = vpop.f32.mrf.mxu0
  %v162 = vadd.f32 %v122, %v161
  %163 = vmatmul.f32.gmra.mxu0 %v97
  %v164 = vpop.f32.mrf.mxu0
  %v165 = vadd.f32 %v122, %v164
  %166 = vmatmul.f32.gmra.mxu0 %v98
  %v167 = vpop.f32.mrf.mxu0
  %v168 = vadd.f32 %v122, %v167
  %169 = vmatmul.f32.gmra.mxu0 %v99
  %v170 = vpop.f32.mrf.mxu0
  %v171 = vadd.f32 %v122, %v170
  %172 = vmatmul.f32.gmra.mxu0 %v100
  %v173 = vpop.f32.mrf.mxu0
  %v174 = vadd.f32 %v122, %v173
  %175 = vmatmul.f32.gmra.mxu0 %v101
  %v176 = vpop.f32.mrf.mxu0
  %v177 = vadd.f32 %v122, %v176
  %178 = vmatmul.f32.gmra.mxu0 %v102
  %v179 = vpop.f32.mrf.mxu0
  %v180 = vadd.f32 %v122, %v179
  %181 = vmatmul.f32.gmra.mxu0 %v103
  %v182 = vpop.f32.mrf.mxu0
  %v183 = vadd.f32 %v122, %v182
  %184 = vmatmul.f32.gmra.mxu0 %v104
  %v185 = vpop.f32.mrf.mxu0
  %v186 = vadd.f32 %v122, %v185
  %187 = vdwg.mxu0
  %v188 = vmax.f32 %v141, 0.0
  %v189 = vmax.f32 %v144, 0.0
  %v190 = vmax.f32 %v147, 0.0
  %v191 = vmax.f32 %v150, 0.0
  %v192 = vmax.f32 %v153, 0.0
  %v193 = vmax.f32 %v156, 0.0
  %v194 = vmax.f32 %v159, 0.0
  %v195 = vmax.f32 %v162, 0.0
  %v196 = vmax.f32 %v165, 0.0
  %v197 = vmax.f32 %v168, 0.0
  %v198 = vmax.f32 %v171, 0.0
  %v199 = vmax.f32 %v174, 0.0
  %v200 = vmax.f32 %v177, 0.0
  %v201 = vmax.f32 %v180, 0.0
  %v202 = vmax.f32 %v183, 0.0
  %v203 = vmax.f32 %v186, 0.0
  %v204 = vpack.c.bf16 %v188, %v188
  %v205 = vpack.c.bf16 %v189, %v189
  %v206 = vpack.c.bf16 %v190, %v190
  %v207 = vpack.c.bf16 %v191, %v191
  %v208 = vpack.c.bf16 %v192, %v192
  %v209 = vpack.c.bf16 %v193, %v193
  %v210 = vpack.c.bf16 %v194, %v194
  %v211 = vpack.c.bf16 %v195, %v195
  %v212 = vpack.c.bf16 %v196, %v196
  %v213 = vpack.c.bf16 %v197, %v197
  %v214 = vpack.c.bf16 %v198, %v198
  %v215 = vpack.c.bf16 %v199, %v199
  %v216 = vpack.c.bf16 %v200, %v200
  %v217 = vpack.c.bf16 %v201, %v201
  %v218 = vpack.c.bf16 %v202, %v202
  %v219 = vpack.c.bf16 %v203, %v203
  %220 = vst [vmem:[%s4] sm:$0xf] %v204
  %221 = vst [vmem:[%s4 + $0x4] sm:$0xf] %v205
  %222 = vst [vmem:[%s4 + $0x8] sm:$0xf] %v206
  %223 = vst [vmem:[%s4 + $0xc] sm:$0xf] %v207
  %224 = vst [vmem:[%s4 + $0x10] sm:$0xf] %v208
  %225 = vst [vmem:[%s4 + $0x14] sm:$0xf] %v209
  %226 = vst [vmem:[%s4 + $0x18] sm:$0xf] %v210
  %227 = vst [vmem:[%s4 + $0x1c] sm:$0xf] %v211
  %228 = vst [vmem:[%s4 + $0x20] sm:$0xf] %v212
  %229 = vst [vmem:[%s4 + $0x24] sm:$0xf] %v213
  %230 = vst [vmem:[%s4 + $0x28] sm:$0xf] %v214
  %231 = vst [vmem:[%s4 + $0x2c] sm:$0xf] %v215
  %232 = vst [vmem:[%s4 + $0x30] sm:$0xf] %v216
  %233 = vst [vmem:[%s4 + $0x34] sm:$0xf] %v217
  %234 = vst [vmem:[%s4 + $0x38] sm:$0xf] %v218
  %235 = vst [vmem:[%s4 + $0x3c] sm:$0xf] %v219
  // Predicated region
  $region18: #{gin_forward.7} parent=0 // pred_check
    _
  $region19: #{gin_forward.7} parent=0 // pred_check_branch
    %237 = sbr.rel (0) target = $region21
  $region20: #{gin_forward.7} parent=0 // pred_region
    _
  $region21: #{gin_forward.7} parent=0 // pred_fallthru
    _
  // Predicated region
  $region22: #{gin_forward.7} parent=0 // pred_check
    _
  $region23: #{gin_forward.7} parent=0 // pred_check_branch
    %239 = sbr.rel (0) target = $region25
  $region24: #{gin_forward.7} parent=0 // pred_region
    _
  $region25: #{gin_forward.7} parent=0 // pred_fallthru
    _

// kernel: gin_forward.6
$region0: #{gin_forward.6}
  #allocation0 [shape = 'u32[]', space=smem, size = 0x4, offset = 0x4, fixed_abs, tag = 'smem constant byte address 0x4 - core index']
  #allocation1 [shape = 'u32[72,128]{1,0:T(1,128)}', space=vmem, size = 0x9000, scoped, tag = 'internal scratch']
  %s0 = inlined_call_operand.vmem [shape: bf16[128,128], index: 0, kind: input, shape index: {}]
  %s1 = inlined_call_operand.vmem [shape: bf16[128,128], index: 1, kind: input, shape index: {}]
  %s2 = inlined_call_operand.vmem [shape: f32[8,128], index: 2, kind: input, shape index: {}]
  %s3 = inlined_call_operand.vmem [shape: f32[128,128], index: 3, kind: output, shape index: {0}]
  %s4 = inlined_call_operand.vmem [shape: f32[8,128], index: 4, kind: output, shape index: {1}]
  %5 = xla_tuple %s3, %s4
  %s6 = sld [smem:[#allocation0]]
  $region38: #{gin_forward.6} parent=0
    _
  %s8 = ssub.s32 1, %s6
  %s9 = scalar_select 0, %s8, %s6
  // Predicated region
  $region2: #{gin_forward.6} parent=0 // pred_check
    _
  $region3: #{gin_forward.6} parent=0 // pred_check_branch
    %11 = sbr.rel (0) target = $region5
  $region4: #{gin_forward.6} parent=0 // pred_region
    _
  $region5: #{gin_forward.6} parent=0 // pred_fallthru
    _
  // Predicated region
  $region6: #{gin_forward.6} parent=0 // pred_check
    _
  $region7: #{gin_forward.6} parent=0 // pred_check_branch
    %13 = sbr.rel (0) target = $region9
  $region8: #{gin_forward.6} parent=0 // pred_region
    _
  $region9: #{gin_forward.6} parent=0 // pred_fallthru
    _
  // Predicated region
  $region10: #{gin_forward.6} parent=0 // pred_check
    _
  $region11: #{gin_forward.6} parent=0 // pred_check_branch
    %15 = sbr.rel (0) target = $region13
  $region12: #{gin_forward.6} parent=0 // pred_region
    _
  $region13: #{gin_forward.6} parent=0 // pred_fallthru
    _
  %p16 = scmp.eq.s32.totalorder 0, 0
  // Predicated region
  $region14: #{gin_forward.6} parent=0 // pred_check
    %p17 = pneg %p16
  $region15: #{gin_forward.6} parent=0 // pred_check_branch
    %19 = sbr.rel (%p17) target = $region17
  $region16: #{gin_forward.6} parent=0 // pred_region
    %20 = vst [vmem:[%s3] sm:$0xff] 0.0
    %21 = vst [vmem:[%s3 + $0x8] sm:$0xff] 0.0
    %22 = vst [vmem:[%s3 + $0x10] sm:$0xff] 0.0
    %23 = vst [vmem:[%s3 + $0x18] sm:$0xff] 0.0
    %24 = vst [vmem:[%s3 + $0x20] sm:$0xff] 0.0
    %25 = vst [vmem:[%s3 + $0x28] sm:$0xff] 0.0
    %26 = vst [vmem:[%s3 + $0x30] sm:$0xff] 0.0
    %27 = vst [vmem:[%s3 + $0x38] sm:$0xff] 0.0
    %28 = vst [vmem:[%s3 + $0x40] sm:$0xff] 0.0
    %29 = vst [vmem:[%s3 + $0x48] sm:$0xff] 0.0
    %30 = vst [vmem:[%s3 + $0x50] sm:$0xff] 0.0
    %31 = vst [vmem:[%s3 + $0x58] sm:$0xff] 0.0
    %32 = vst [vmem:[%s3 + $0x60] sm:$0xff] 0.0
    %33 = vst [vmem:[%s3 + $0x68] sm:$0xff] 0.0
    %34 = vst [vmem:[%s3 + $0x70] sm:$0xff] 0.0
    %35 = vst [vmem:[%s3 + $0x78] sm:$0xff] 0.0
  $region17: #{gin_forward.6} parent=0 // pred_fallthru
    _
  %v36 = vld [vmem:[%s3] sm:$0xff]
  %v37 = vld [vmem:[%s3 + $0x8] sm:$0xff]
  %v38 = vld [vmem:[%s3 + $0x10] sm:$0xff]
  %v39 = vld [vmem:[%s3 + $0x18] sm:$0xff]
  %v40 = vld [vmem:[%s3 + $0x20] sm:$0xff]
  %v41 = vld [vmem:[%s3 + $0x28] sm:$0xff]
  %v42 = vld [vmem:[%s3 + $0x30] sm:$0xff]
  %v43 = vld [vmem:[%s3 + $0x38] sm:$0xff]
  %v44 = vld [vmem:[%s3 + $0x40] sm:$0xff]
  %v45 = vld [vmem:[%s3 + $0x48] sm:$0xff]
  %v46 = vld [vmem:[%s3 + $0x50] sm:$0xff]
  %v47 = vld [vmem:[%s3 + $0x58] sm:$0xff]
  %v48 = vld [vmem:[%s3 + $0x60] sm:$0xff]
  %v49 = vld [vmem:[%s3 + $0x68] sm:$0xff]
  %v50 = vld [vmem:[%s3 + $0x70] sm:$0xff]
  %v51 = vld [vmem:[%s3 + $0x78] sm:$0xff]
  %v52 = vld [vmem:[%s0] sm:$0xf]
  %v53 = vld [vmem:[%s0 + $0x4] sm:$0xf]
  %v54 = vld [vmem:[%s0 + $0x8] sm:$0xf]
  %v55 = vld [vmem:[%s0 + $0xc] sm:$0xf]
  %v56 = vld [vmem:[%s0 + $0x10] sm:$0xf]
  %v57 = vld [vmem:[%s0 + $0x14] sm:$0xf]
  %v58 = vld [vmem:[%s0 + $0x18] sm:$0xf]
  %v59 = vld [vmem:[%s0 + $0x1c] sm:$0xf]
  %v60 = vld [vmem:[%s0 + $0x20] sm:$0xf]
  %v61 = vld [vmem:[%s0 + $0x24] sm:$0xf]
  %v62 = vld [vmem:[%s0 + $0x28] sm:$0xf]
  %v63 = vld [vmem:[%s0 + $0x2c] sm:$0xf]
  %v64 = vld [vmem:[%s0 + $0x30] sm:$0xf]
  %v65 = vld [vmem:[%s0 + $0x34] sm:$0xf]
  %v66 = vld [vmem:[%s0 + $0x38] sm:$0xf]
  %v67 = vld [vmem:[%s0 + $0x3c] sm:$0xf]
  %v68 = vld [vmem:[%s1] sm:$0xf]
  %v69 = vld [vmem:[%s1 + $0x4] sm:$0xf]
  %v70 = vld [vmem:[%s1 + $0x8] sm:$0xf]
  %v71 = vld [vmem:[%s1 + $0xc] sm:$0xf]
  %v72 = vld [vmem:[%s1 + $0x10] sm:$0xf]
  %v73 = vld [vmem:[%s1 + $0x14] sm:$0xf]
  %v74 = vld [vmem:[%s1 + $0x18] sm:$0xf]
  %v75 = vld [vmem:[%s1 + $0x1c] sm:$0xf]
  %v76 = vld [vmem:[%s1 + $0x20] sm:$0xf]
  %v77 = vld [vmem:[%s1 + $0x24] sm:$0xf]
  %v78 = vld [vmem:[%s1 + $0x28] sm:$0xf]
  %v79 = vld [vmem:[%s1 + $0x2c] sm:$0xf]
  %v80 = vld [vmem:[%s1 + $0x30] sm:$0xf]
  %v81 = vld [vmem:[%s1 + $0x34] sm:$0xf]
  %v82 = vld [vmem:[%s1 + $0x38] sm:$0xf]
  %v83 = vld [vmem:[%s1 + $0x3c] sm:$0xf]
  %v100 = vunpack.c.l.b16 %v52
  %v101 = vunpack.c.l.b16 %v53
  %v102 = vunpack.c.l.b16 %v54
  %v103 = vunpack.c.l.b16 %v55
  %v104 = vunpack.c.l.b16 %v56
  %v105 = vunpack.c.l.b16 %v57
  %v106 = vunpack.c.l.b16 %v58
  %v107 = vunpack.c.l.b16 %v59
  %v108 = vunpack.c.l.b16 %v60
  %v109 = vunpack.c.l.b16 %v61
  %v110 = vunpack.c.l.b16 %v62
  %v111 = vunpack.c.l.b16 %v63
  %v112 = vunpack.c.l.b16 %v64
  %v113 = vunpack.c.l.b16 %v65
  %v114 = vunpack.c.l.b16 %v66
  %v115 = vunpack.c.l.b16 %v67
  %v116 = vpack.c.b16 %v101, %v100
  %v117 = vpack.c.b16 %v103, %v102
  %v118 = vpack.c.b16 %v105, %v104
  %v119 = vpack.c.b16 %v107, %v106
  %v120 = vpack.c.b16 %v109, %v108
  %v121 = vpack.c.b16 %v111, %v110
  %v122 = vpack.c.b16 %v113, %v112
  %v123 = vpack.c.b16 %v115, %v114
  %v148 = vunpack.c.l.b16 %v68
  %v149 = vunpack.c.l.b16 %v69
  %v150 = vunpack.c.l.b16 %v70
  %v151 = vunpack.c.l.b16 %v71
  %v152 = vunpack.c.l.b16 %v72
  %v153 = vunpack.c.l.b16 %v73
  %v154 = vunpack.c.l.b16 %v74
  %v155 = vunpack.c.l.b16 %v75
  %v156 = vunpack.c.l.b16 %v76
  %v157 = vunpack.c.l.b16 %v77
  %v158 = vunpack.c.l.b16 %v78
  %v159 = vunpack.c.l.b16 %v79
  %v160 = vunpack.c.l.b16 %v80
  %v161 = vunpack.c.l.b16 %v81
  %v162 = vunpack.c.l.b16 %v82
  %v163 = vunpack.c.l.b16 %v83
  %v164 = vpack.c.b16 %v149, %v148
  %v165 = vpack.c.b16 %v151, %v150
  %v166 = vpack.c.b16 %v153, %v152
  %v167 = vpack.c.b16 %v155, %v154
  %v168 = vpack.c.b16 %v157, %v156
  %v169 = vpack.c.b16 %v159, %v158
  %v170 = vpack.c.b16 %v161, %v160
  %v171 = vpack.c.b16 %v163, %v162
  %180 = vmatpush.bf16.msra.mxu0 %v171
  %181 = vmatpush.bf16.msra.mxu0 %v170
  %182 = vmatpush.bf16.msra.mxu0 %v169
  %183 = vmatpush.bf16.msra.mxu0 %v168
  %184 = vmatpush.bf16.msra.mxu0 %v167
  %185 = vmatpush.bf16.msra.mxu0 %v166
  %186 = vmatpush.bf16.msra.mxu0 %v165
  %187 = vmatpush.bf16.msra.mxu0 %v164
  %188 = vmatmul.bf16.gmra.mxu0 %v116
  %v189 = vpop.f32.mrf.mxu0
  %v190 = vadd.f32 0.0, %v189
  %v191 = vpop.f32.mrf.mxu0
  %v192 = vadd.f32 0.0, %v191
  %193 = vmatmul.bf16.gmra.mxu0 %v117
  %v194 = vpop.f32.mrf.mxu0
  %v195 = vadd.f32 0.0, %v194
  %v196 = vpop.f32.mrf.mxu0
  %v197 = vadd.f32 0.0, %v196
  %198 = vmatmul.bf16.gmra.mxu0 %v118
  %v199 = vpop.f32.mrf.mxu0
  %v200 = vadd.f32 0.0, %v199
  %v201 = vpop.f32.mrf.mxu0
  %v202 = vadd.f32 0.0, %v201
  %203 = vmatmul.bf16.gmra.mxu0 %v119
  %v204 = vpop.f32.mrf.mxu0
  %v205 = vadd.f32 0.0, %v204
  %v206 = vpop.f32.mrf.mxu0
  %v207 = vadd.f32 0.0, %v206
  %208 = vmatmul.bf16.gmra.mxu0 %v120
  %v209 = vpop.f32.mrf.mxu0
  %v210 = vadd.f32 0.0, %v209
  %v211 = vpop.f32.mrf.mxu0
  %v212 = vadd.f32 0.0, %v211
  %213 = vmatmul.bf16.gmra.mxu0 %v121
  %v214 = vpop.f32.mrf.mxu0
  %v215 = vadd.f32 0.0, %v214
  %v216 = vpop.f32.mrf.mxu0
  %v217 = vadd.f32 0.0, %v216
  %218 = vmatmul.bf16.gmra.mxu0 %v122
  %v219 = vpop.f32.mrf.mxu0
  %v220 = vadd.f32 0.0, %v219
  %v221 = vpop.f32.mrf.mxu0
  %v222 = vadd.f32 0.0, %v221
  %223 = vmatmul.bf16.gmra.mxu0 %v123
  %v224 = vpop.f32.mrf.mxu0
  %v225 = vadd.f32 0.0, %v224
  %v226 = vpop.f32.mrf.mxu0
  %v227 = vadd.f32 0.0, %v226
  %228 = vdwg.mxu0
  %v229 = vadd.f32 %v36, %v190
  %v230 = vadd.f32 %v37, %v192
  %v231 = vadd.f32 %v38, %v195
  %v232 = vadd.f32 %v39, %v197
  %v233 = vadd.f32 %v40, %v200
  %v234 = vadd.f32 %v41, %v202
  %v235 = vadd.f32 %v42, %v205
  %v236 = vadd.f32 %v43, %v207
  %v237 = vadd.f32 %v44, %v210
  %v238 = vadd.f32 %v45, %v212
  %v239 = vadd.f32 %v46, %v215
  %v240 = vadd.f32 %v47, %v217
  %v241 = vadd.f32 %v48, %v220
  %v242 = vadd.f32 %v49, %v222
  %v243 = vadd.f32 %v50, %v225
  %v244 = vadd.f32 %v51, %v227
  %245 = vst [vmem:[%s3] sm:$0xff] %v229
  %246 = vst [vmem:[%s3 + $0x8] sm:$0xff] %v230
  %247 = vst [vmem:[%s3 + $0x10] sm:$0xff] %v231
  %248 = vst [vmem:[%s3 + $0x18] sm:$0xff] %v232
  %249 = vst [vmem:[%s3 + $0x20] sm:$0xff] %v233
  %250 = vst [vmem:[%s3 + $0x28] sm:$0xff] %v234
  %251 = vst [vmem:[%s3 + $0x30] sm:$0xff] %v235
  %252 = vst [vmem:[%s3 + $0x38] sm:$0xff] %v236
  %253 = vst [vmem:[%s3 + $0x40] sm:$0xff] %v237
  %254 = vst [vmem:[%s3 + $0x48] sm:$0xff] %v238
  %255 = vst [vmem:[%s3 + $0x50] sm:$0xff] %v239
  %256 = vst [vmem:[%s3 + $0x58] sm:$0xff] %v240
  %257 = vst [vmem:[%s3 + $0x60] sm:$0xff] %v241
  %258 = vst [vmem:[%s3 + $0x68] sm:$0xff] %v242
  %259 = vst [vmem:[%s3 + $0x70] sm:$0xff] %v243
  %260 = vst [vmem:[%s3 + $0x78] sm:$0xff] %v244
  // Predicated region
  $region18: #{gin_forward.6} parent=0 // pred_check
    %p261 = pneg %p16
  $region19: #{gin_forward.6} parent=0 // pred_check_branch
    %263 = sbr.rel (%p261) target = $region21
  $region20: #{gin_forward.6} parent=0 // pred_region
    %v264 = vld [vmem:[%s3] sm:$0xff]
    %v265 = vld [vmem:[%s3 + $0x8] sm:$0xff]
    %v266 = vld [vmem:[%s3 + $0x10] sm:$0xff]
    %v267 = vld [vmem:[%s3 + $0x18] sm:$0xff]
    %v268 = vld [vmem:[%s3 + $0x20] sm:$0xff]
    %v269 = vld [vmem:[%s3 + $0x28] sm:$0xff]
    %v270 = vld [vmem:[%s3 + $0x30] sm:$0xff]
    %v271 = vld [vmem:[%s3 + $0x38] sm:$0xff]
    %v272 = vld [vmem:[%s3 + $0x40] sm:$0xff]
    %v273 = vld [vmem:[%s3 + $0x48] sm:$0xff]
    %v274 = vld [vmem:[%s3 + $0x50] sm:$0xff]
    %v275 = vld [vmem:[%s3 + $0x58] sm:$0xff]
    %v276 = vld [vmem:[%s3 + $0x60] sm:$0xff]
    %v277 = vld [vmem:[%s3 + $0x68] sm:$0xff]
    %v278 = vld [vmem:[%s3 + $0x70] sm:$0xff]
    %v279 = vld [vmem:[%s3 + $0x78] sm:$0xff]
    %v280 = vld [vmem:[%s2] sm:$0x1]
    %v281 = vperm.slane %v280, 0
    %v282 = vadd.f32 %v264, %v281
    %v283 = vadd.f32 %v265, %v281
    %v284 = vadd.f32 %v266, %v281
    %v285 = vadd.f32 %v267, %v281
    %v286 = vadd.f32 %v268, %v281
    %v287 = vadd.f32 %v269, %v281
    %v288 = vadd.f32 %v270, %v281
    %v289 = vadd.f32 %v271, %v281
    %v290 = vadd.f32 %v272, %v281
    %v291 = vadd.f32 %v273, %v281
    %v292 = vadd.f32 %v274, %v281
    %v293 = vadd.f32 %v275, %v281
    %v294 = vadd.f32 %v276, %v281
    %v295 = vadd.f32 %v277, %v281
    %v296 = vadd.f32 %v278, %v281
    %v297 = vadd.f32 %v279, %v281
    %298 = vst [vmem:[%s3] sm:$0xff] %v282
    %299 = vst [vmem:[%s3 + $0x8] sm:$0xff] %v283
    %300 = vst [vmem:[%s3 + $0x10] sm:$0xff] %v284
    %301 = vst [vmem:[%s3 + $0x18] sm:$0xff] %v285
    %302 = vst [vmem:[%s3 + $0x20] sm:$0xff] %v286
    %303 = vst [vmem:[%s3 + $0x28] sm:$0xff] %v287
    %304 = vst [vmem:[%s3 + $0x30] sm:$0xff] %v288
    %305 = vst [vmem:[%s3 + $0x38] sm:$0xff] %v289
    %306 = vst [vmem:[%s3 + $0x40] sm:$0xff] %v290
    %307 = vst [vmem:[%s3 + $0x48] sm:$0xff] %v291
    %308 = vst [vmem:[%s3 + $0x50] sm:$0xff] %v292
    %309 = vst [vmem:[%s3 + $0x58] sm:$0xff] %v293
    %310 = vst [vmem:[%s3 + $0x60] sm:$0xff] %v294
    %311 = vst [vmem:[%s3 + $0x68] sm:$0xff] %v295
    %312 = vst [vmem:[%s3 + $0x70] sm:$0xff] %v296
    %313 = vst [vmem:[%s3 + $0x78] sm:$0xff] %v297
    %s314 = smul.u32 0, 128
    %v315 = vlaneseq
    %v316 = vshrl.u32 %v315, 7
    %v317 = vadd.s32 %v316, 8
    %v318 = vadd.s32 %v316, 16
    %v319 = vadd.s32 %v316, 24
    %v320 = vadd.s32 %v316, 32
    %v321 = vadd.s32 %v316, 40
    %v322 = vadd.s32 %v316, 48
    %v323 = vadd.s32 %v316, 56
    %v324 = vadd.s32 %v316, 64
    %v325 = vadd.s32 %v316, 72
    %v326 = vadd.s32 %v316, 80
    %v327 = vadd.s32 %v316, 88
    %v328 = vadd.s32 %v316, 96
    %v329 = vadd.s32 %v316, 104
    %v330 = vadd.s32 %v316, 112
    %v331 = vadd.s32 %v316, 120
    %v332 = vstv %s314
    %v333 = vadd.s32 %v332, %v316
    %v334 = vadd.s32 %v332, %v317
    %v335 = vadd.s32 %v332, %v318
    %v336 = vadd.s32 %v332, %v319
    %v337 = vadd.s32 %v332, %v320
    %v338 = vadd.s32 %v332, %v321
    %v339 = vadd.s32 %v332, %v322
    %v340 = vadd.s32 %v332, %v323
    %v341 = vadd.s32 %v332, %v324
    %v342 = vadd.s32 %v332, %v325
    %v343 = vadd.s32 %v332, %v326
    %v344 = vadd.s32 %v332, %v327
    %v345 = vadd.s32 %v332, %v328
    %v346 = vadd.s32 %v332, %v329
    %v347 = vadd.s32 %v332, %v330
    %v348 = vadd.s32 %v332, %v331
    %vm349 = vcmp.lt.s32.totalorder %v333, 16
    %vm350 = vcmp.lt.s32.totalorder %v334, 16
    %vm351 = vcmp.lt.s32.totalorder %v335, 16
    %vm352 = vcmp.lt.s32.totalorder %v336, 16
    %vm353 = vcmp.lt.s32.totalorder %v337, 16
    %vm354 = vcmp.lt.s32.totalorder %v338, 16
    %vm355 = vcmp.lt.s32.totalorder %v339, 16
    %vm356 = vcmp.lt.s32.totalorder %v340, 16
    %vm357 = vcmp.lt.s32.totalorder %v341, 16
    %vm358 = vcmp.lt.s32.totalorder %v342, 16
    %vm359 = vcmp.lt.s32.totalorder %v343, 16
    %vm360 = vcmp.lt.s32.totalorder %v344, 16
    %vm361 = vcmp.lt.s32.totalorder %v345, 16
    %vm362 = vcmp.lt.s32.totalorder %v346, 16
    %vm363 = vcmp.lt.s32.totalorder %v347, 16
    %vm364 = vcmp.lt.s32.totalorder %v348, 16
    %v365 = vsel %vm349, %v282, 0.0
    %v366 = vsel %vm350, %v283, 0.0
    %v367 = vsel %vm351, %v284, 0.0
    %v368 = vsel %vm352, %v285, 0.0
    %v369 = vsel %vm353, %v286, 0.0
    %v370 = vsel %vm354, %v287, 0.0
    %v371 = vsel %vm355, %v288, 0.0
    %v372 = vsel %vm356, %v289, 0.0
    %v373 = vsel %vm357, %v290, 0.0
    %v374 = vsel %vm358, %v291, 0.0
    %v375 = vsel %vm359, %v292, 0.0
    %v376 = vsel %vm360, %v293, 0.0
    %v377 = vsel %vm361, %v294, 0.0
    %v378 = vsel %vm362, %v295, 0.0
    %v379 = vsel %vm363, %v296, 0.0
    %v380 = vsel %vm364, %v297, 0.0
    %v381 = vadd.f32 %v365, %v366
    %v382 = vadd.f32 %v381, %v367
    %v383 = vadd.f32 %v382, %v368
    %v384 = vadd.f32 %v383, %v369
    %v385 = vadd.f32 %v384, %v370
    %v386 = vadd.f32 %v385, %v371
    %v387 = vadd.f32 %v386, %v372
    %v388 = vadd.f32 %v387, %v373
    %v389 = vadd.f32 %v388, %v374
    %v390 = vadd.f32 %v389, %v375
    %v391 = vadd.f32 %v390, %v376
    %v392 = vadd.f32 %v391, %v377
    %v393 = vadd.f32 %v392, %v378
    %v394 = vadd.f32 %v393, %v379
    %v395 = vadd.f32 %v394, %v380
    %v396 = vrot.slane %v395, 4
    %v397 = vadd.f32 %v395, %v396
    %v398 = vrot.slane %v397, 2
    %v399 = vadd.f32 %v397, %v398
    %v400 = vrot.slane %v399, 1
    %v401 = vadd.f32 %v399, %v400
    %402 = vst [vmem:[%s4] sm:$0x1] %v401
    %v403 = vmul.f32 %v365, %v365
    %v404 = vmul.f32 %v366, %v366
    %v405 = vmul.f32 %v367, %v367
    %v406 = vmul.f32 %v368, %v368
    %v407 = vmul.f32 %v369, %v369
    %v408 = vmul.f32 %v370, %v370
    %v409 = vmul.f32 %v371, %v371
    %v410 = vmul.f32 %v372, %v372
    %v411 = vmul.f32 %v373, %v373
    %v412 = vmul.f32 %v374, %v374
    %v413 = vmul.f32 %v375, %v375
    %v414 = vmul.f32 %v376, %v376
    %v415 = vmul.f32 %v377, %v377
    %v416 = vmul.f32 %v378, %v378
    %v417 = vmul.f32 %v379, %v379
    %v418 = vmul.f32 %v380, %v380
    %v419 = vadd.f32 %v403, %v404
    %v420 = vadd.f32 %v419, %v405
    %v421 = vadd.f32 %v420, %v406
    %v422 = vadd.f32 %v421, %v407
    %v423 = vadd.f32 %v422, %v408
    %v424 = vadd.f32 %v423, %v409
    %v425 = vadd.f32 %v424, %v410
    %v426 = vadd.f32 %v425, %v411
    %v427 = vadd.f32 %v426, %v412
    %v428 = vadd.f32 %v427, %v413
    %v429 = vadd.f32 %v428, %v414
    %v430 = vadd.f32 %v429, %v415
    %v431 = vadd.f32 %v430, %v416
    %v432 = vadd.f32 %v431, %v417
    %v433 = vadd.f32 %v432, %v418
    %v434 = vrot.slane %v433, 4
    %v435 = vadd.f32 %v433, %v434
    %v436 = vrot.slane %v435, 2
    %v437 = vadd.f32 %v435, %v436
    %v438 = vrot.slane %v437, 1
    %v439 = vadd.f32 %v437, %v438
    %440 = vst [vmem:[%s4 + $0x1] sm:$0x1] %v439
  $region21: #{gin_forward.6} parent=0 // pred_fallthru
    _
  // Predicated region
  $region22: #{gin_forward.6} parent=0 // pred_check
    _
  $region23: #{gin_forward.6} parent=0 // pred_check_branch
    %442 = sbr.rel (0) target = $region25
  $region24: #{gin_forward.6} parent=0 // pred_region
    _
  $region25: #{gin_forward.6} parent=0 // pred_fallthru
    _
  // Predicated region
  $region26: #{gin_forward.6} parent=0 // pred_check
    _
  $region27: #{gin_forward.6} parent=0 // pred_check_branch
    %444 = sbr.rel (0) target = $region29
  $region28: #{gin_forward.6} parent=0 // pred_region
    _
  $region29: #{gin_forward.6} parent=0 // pred_fallthru
    _
  // Predicated region
  $region30: #{gin_forward.6} parent=0 // pred_check
    _
  $region31: #{gin_forward.6} parent=0 // pred_check_branch
    %446 = sbr.rel (0) target = $region33
  $region32: #{gin_forward.6} parent=0 // pred_region
    _
  $region33: #{gin_forward.6} parent=0 // pred_fallthru
    _
  // Predicated region
  $region34: #{gin_forward.6} parent=0 // pred_check
    _
  $region35: #{gin_forward.6} parent=0 // pred_check_branch
    %448 = sbr.rel (0) target = $region37
  $region36: #{gin_forward.6} parent=0 // pred_region
    _
  $region37: #{gin_forward.6} parent=0 // pred_fallthru
    _

// kernel: gin_forward.8
$region0: #{gin_forward.8}
  #allocation0 [shape = 'u32[]', space=smem, size = 0x4, offset = 0x4, fixed_abs, tag = 'smem constant byte address 0x4 - core index']
  #allocation1 [shape = 'u32[72,128]{1,0:T(1,128)}', space=vmem, size = 0x9000, scoped, tag = 'internal scratch']
  %s0 = inlined_call_operand.vmem [shape: bf16[128,128], index: 0, kind: input, shape index: {}]
  %s1 = inlined_call_operand.vmem [shape: bf16[128,128], index: 1, kind: input, shape index: {}]
  %s2 = inlined_call_operand.vmem [shape: f32[128,128], index: 2, kind: input, shape index: {}]
  %s3 = inlined_call_operand.vmem [shape: f32[8,128], index: 3, kind: input, shape index: {}]
  %s4 = inlined_call_operand.vmem [shape: f32[128,128], index: 4, kind: output, shape index: {0}]
  %s5 = inlined_call_operand.vmem [shape: f32[8,128], index: 5, kind: output, shape index: {1}]
  %6 = xla_tuple %s4, %s5
  %s7 = sld [smem:[#allocation0]]
  $region42: #{gin_forward.8} parent=0
    _
  %s9 = ssub.s32 1, %s7
  %s10 = scalar_select 0, %s9, %s7
  // Predicated region
  $region2: #{gin_forward.8} parent=0 // pred_check
    _
  $region3: #{gin_forward.8} parent=0 // pred_check_branch
    %12 = sbr.rel (0) target = $region5
  $region4: #{gin_forward.8} parent=0 // pred_region
    _
  $region5: #{gin_forward.8} parent=0 // pred_fallthru
    _
  // Predicated region
  $region6: #{gin_forward.8} parent=0 // pred_check
    _
  $region7: #{gin_forward.8} parent=0 // pred_check_branch
    %14 = sbr.rel (0) target = $region9
  $region8: #{gin_forward.8} parent=0 // pred_region
    _
  $region9: #{gin_forward.8} parent=0 // pred_fallthru
    _
  // Predicated region
  $region10: #{gin_forward.8} parent=0 // pred_check
    _
  $region11: #{gin_forward.8} parent=0 // pred_check_branch
    %16 = sbr.rel (0) target = $region13
  $region12: #{gin_forward.8} parent=0 // pred_region
    _
  $region13: #{gin_forward.8} parent=0 // pred_fallthru
    _
  // Predicated region
  $region14: #{gin_forward.8} parent=0 // pred_check
    _
  $region15: #{gin_forward.8} parent=0 // pred_check_branch
    %18 = sbr.rel (0) target = $region17
  $region16: #{gin_forward.8} parent=0 // pred_region
    _
  $region17: #{gin_forward.8} parent=0 // pred_fallthru
    _
  %p19 = scmp.eq.s32.totalorder 0, 0
  // Predicated region
  $region18: #{gin_forward.8} parent=0 // pred_check
    %p20 = pneg %p19
  $region19: #{gin_forward.8} parent=0 // pred_check_branch
    %22 = sbr.rel (%p20) target = $region21
  $region20: #{gin_forward.8} parent=0 // pred_region
    %23 = vst [vmem:[%s4] sm:$0xff] 0.0
    %24 = vst [vmem:[%s4 + $0x8] sm:$0xff] 0.0
    %25 = vst [vmem:[%s4 + $0x10] sm:$0xff] 0.0
    %26 = vst [vmem:[%s4 + $0x18] sm:$0xff] 0.0
    %27 = vst [vmem:[%s4 + $0x20] sm:$0xff] 0.0
    %28 = vst [vmem:[%s4 + $0x28] sm:$0xff] 0.0
    %29 = vst [vmem:[%s4 + $0x30] sm:$0xff] 0.0
    %30 = vst [vmem:[%s4 + $0x38] sm:$0xff] 0.0
    %31 = vst [vmem:[%s4 + $0x40] sm:$0xff] 0.0
    %32 = vst [vmem:[%s4 + $0x48] sm:$0xff] 0.0
    %33 = vst [vmem:[%s4 + $0x50] sm:$0xff] 0.0
    %34 = vst [vmem:[%s4 + $0x58] sm:$0xff] 0.0
    %35 = vst [vmem:[%s4 + $0x60] sm:$0xff] 0.0
    %36 = vst [vmem:[%s4 + $0x68] sm:$0xff] 0.0
    %37 = vst [vmem:[%s4 + $0x70] sm:$0xff] 0.0
    %38 = vst [vmem:[%s4 + $0x78] sm:$0xff] 0.0
  $region21: #{gin_forward.8} parent=0 // pred_fallthru
    _
  %v39 = vld [vmem:[%s4] sm:$0xff]
  %v40 = vld [vmem:[%s4 + $0x8] sm:$0xff]
  %v41 = vld [vmem:[%s4 + $0x10] sm:$0xff]
  %v42 = vld [vmem:[%s4 + $0x18] sm:$0xff]
  %v43 = vld [vmem:[%s4 + $0x20] sm:$0xff]
  %v44 = vld [vmem:[%s4 + $0x28] sm:$0xff]
  %v45 = vld [vmem:[%s4 + $0x30] sm:$0xff]
  %v46 = vld [vmem:[%s4 + $0x38] sm:$0xff]
  %v47 = vld [vmem:[%s4 + $0x40] sm:$0xff]
  %v48 = vld [vmem:[%s4 + $0x48] sm:$0xff]
  %v49 = vld [vmem:[%s4 + $0x50] sm:$0xff]
  %v50 = vld [vmem:[%s4 + $0x58] sm:$0xff]
  %v51 = vld [vmem:[%s4 + $0x60] sm:$0xff]
  %v52 = vld [vmem:[%s4 + $0x68] sm:$0xff]
  %v53 = vld [vmem:[%s4 + $0x70] sm:$0xff]
  %v54 = vld [vmem:[%s4 + $0x78] sm:$0xff]
  %v55 = vld [vmem:[%s0] sm:$0xf]
  %v56 = vld [vmem:[%s0 + $0x4] sm:$0xf]
  %v57 = vld [vmem:[%s0 + $0x8] sm:$0xf]
  %v58 = vld [vmem:[%s0 + $0xc] sm:$0xf]
  %v59 = vld [vmem:[%s0 + $0x10] sm:$0xf]
  %v60 = vld [vmem:[%s0 + $0x14] sm:$0xf]
  %v61 = vld [vmem:[%s0 + $0x18] sm:$0xf]
  %v62 = vld [vmem:[%s0 + $0x1c] sm:$0xf]
  %v63 = vld [vmem:[%s0 + $0x20] sm:$0xf]
  %v64 = vld [vmem:[%s0 + $0x24] sm:$0xf]
  %v65 = vld [vmem:[%s0 + $0x28] sm:$0xf]
  %v66 = vld [vmem:[%s0 + $0x2c] sm:$0xf]
  %v67 = vld [vmem:[%s0 + $0x30] sm:$0xf]
  %v68 = vld [vmem:[%s0 + $0x34] sm:$0xf]
  %v69 = vld [vmem:[%s0 + $0x38] sm:$0xf]
  %v70 = vld [vmem:[%s0 + $0x3c] sm:$0xf]
  %v71 = vld [vmem:[%s1] sm:$0xf]
  %v72 = vld [vmem:[%s1 + $0x4] sm:$0xf]
  %v73 = vld [vmem:[%s1 + $0x8] sm:$0xf]
  %v74 = vld [vmem:[%s1 + $0xc] sm:$0xf]
  %v75 = vld [vmem:[%s1 + $0x10] sm:$0xf]
  %v76 = vld [vmem:[%s1 + $0x14] sm:$0xf]
  %v77 = vld [vmem:[%s1 + $0x18] sm:$0xf]
  %v78 = vld [vmem:[%s1 + $0x1c] sm:$0xf]
  %v79 = vld [vmem:[%s1 + $0x20] sm:$0xf]
  %v80 = vld [vmem:[%s1 + $0x24] sm:$0xf]
  %v81 = vld [vmem:[%s1 + $0x28] sm:$0xf]
  %v82 = vld [vmem:[%s1 + $0x2c] sm:$0xf]
  %v83 = vld [vmem:[%s1 + $0x30] sm:$0xf]
  %v84 = vld [vmem:[%s1 + $0x34] sm:$0xf]
  %v85 = vld [vmem:[%s1 + $0x38] sm:$0xf]
  %v86 = vld [vmem:[%s1 + $0x3c] sm:$0xf]
  %v103 = vunpack.c.l.b16 %v55
  %v104 = vunpack.c.l.b16 %v56
  %v105 = vunpack.c.l.b16 %v57
  %v106 = vunpack.c.l.b16 %v58
  %v107 = vunpack.c.l.b16 %v59
  %v108 = vunpack.c.l.b16 %v60
  %v109 = vunpack.c.l.b16 %v61
  %v110 = vunpack.c.l.b16 %v62
  %v111 = vunpack.c.l.b16 %v63
  %v112 = vunpack.c.l.b16 %v64
  %v113 = vunpack.c.l.b16 %v65
  %v114 = vunpack.c.l.b16 %v66
  %v115 = vunpack.c.l.b16 %v67
  %v116 = vunpack.c.l.b16 %v68
  %v117 = vunpack.c.l.b16 %v69
  %v118 = vunpack.c.l.b16 %v70
  %v119 = vpack.c.b16 %v104, %v103
  %v120 = vpack.c.b16 %v106, %v105
  %v121 = vpack.c.b16 %v108, %v107
  %v122 = vpack.c.b16 %v110, %v109
  %v123 = vpack.c.b16 %v112, %v111
  %v124 = vpack.c.b16 %v114, %v113
  %v125 = vpack.c.b16 %v116, %v115
  %v126 = vpack.c.b16 %v118, %v117
  %v151 = vunpack.c.l.b16 %v71
  %v152 = vunpack.c.l.b16 %v72
  %v153 = vunpack.c.l.b16 %v73
  %v154 = vunpack.c.l.b16 %v74
  %v155 = vunpack.c.l.b16 %v75
  %v156 = vunpack.c.l.b16 %v76
  %v157 = vunpack.c.l.b16 %v77
  %v158 = vunpack.c.l.b16 %v78
  %v159 = vunpack.c.l.b16 %v79
  %v160 = vunpack.c.l.b16 %v80
  %v161 = vunpack.c.l.b16 %v81
  %v162 = vunpack.c.l.b16 %v82
  %v163 = vunpack.c.l.b16 %v83
  %v164 = vunpack.c.l.b16 %v84
  %v165 = vunpack.c.l.b16 %v85
  %v166 = vunpack.c.l.b16 %v86
  %v167 = vpack.c.b16 %v152, %v151
  %v168 = vpack.c.b16 %v154, %v153
  %v169 = vpack.c.b16 %v156, %v155
  %v170 = vpack.c.b16 %v158, %v157
  %v171 = vpack.c.b16 %v160, %v159
  %v172 = vpack.c.b16 %v162, %v161
  %v173 = vpack.c.b16 %v164, %v163
  %v174 = vpack.c.b16 %v166, %v165
  %183 = vmatpush.bf16.msra.mxu0 %v174
  %184 = vmatpush.bf16.msra.mxu0 %v173
  %185 = vmatpush.bf16.msra.mxu0 %v172
  %186 = vmatpush.bf16.msra.mxu0 %v171
  %187 = vmatpush.bf16.msra.mxu0 %v170
  %188 = vmatpush.bf16.msra.mxu0 %v169
  %189 = vmatpush.bf16.msra.mxu0 %v168
  %190 = vmatpush.bf16.msra.mxu0 %v167
  %191 = vmatmul.bf16.gmra.mxu0 %v119
  %v192 = vpop.f32.mrf.mxu0
  %v193 = vadd.f32 0.0, %v192
  %v194 = vpop.f32.mrf.mxu0
  %v195 = vadd.f32 0.0, %v194
  %196 = vmatmul.bf16.gmra.mxu0 %v120
  %v197 = vpop.f32.mrf.mxu0
  %v198 = vadd.f32 0.0, %v197
  %v199 = vpop.f32.mrf.mxu0
  %v200 = vadd.f32 0.0, %v199
  %201 = vmatmul.bf16.gmra.mxu0 %v121
  %v202 = vpop.f32.mrf.mxu0
  %v203 = vadd.f32 0.0, %v202
  %v204 = vpop.f32.mrf.mxu0
  %v205 = vadd.f32 0.0, %v204
  %206 = vmatmul.bf16.gmra.mxu0 %v122
  %v207 = vpop.f32.mrf.mxu0
  %v208 = vadd.f32 0.0, %v207
  %v209 = vpop.f32.mrf.mxu0
  %v210 = vadd.f32 0.0, %v209
  %211 = vmatmul.bf16.gmra.mxu0 %v123
  %v212 = vpop.f32.mrf.mxu0
  %v213 = vadd.f32 0.0, %v212
  %v214 = vpop.f32.mrf.mxu0
  %v215 = vadd.f32 0.0, %v214
  %216 = vmatmul.bf16.gmra.mxu0 %v124
  %v217 = vpop.f32.mrf.mxu0
  %v218 = vadd.f32 0.0, %v217
  %v219 = vpop.f32.mrf.mxu0
  %v220 = vadd.f32 0.0, %v219
  %221 = vmatmul.bf16.gmra.mxu0 %v125
  %v222 = vpop.f32.mrf.mxu0
  %v223 = vadd.f32 0.0, %v222
  %v224 = vpop.f32.mrf.mxu0
  %v225 = vadd.f32 0.0, %v224
  %226 = vmatmul.bf16.gmra.mxu0 %v126
  %v227 = vpop.f32.mrf.mxu0
  %v228 = vadd.f32 0.0, %v227
  %v229 = vpop.f32.mrf.mxu0
  %v230 = vadd.f32 0.0, %v229
  %231 = vdwg.mxu0
  %v232 = vadd.f32 %v39, %v193
  %v233 = vadd.f32 %v40, %v195
  %v234 = vadd.f32 %v41, %v198
  %v235 = vadd.f32 %v42, %v200
  %v236 = vadd.f32 %v43, %v203
  %v237 = vadd.f32 %v44, %v205
  %v238 = vadd.f32 %v45, %v208
  %v239 = vadd.f32 %v46, %v210
  %v240 = vadd.f32 %v47, %v213
  %v241 = vadd.f32 %v48, %v215
  %v242 = vadd.f32 %v49, %v218
  %v243 = vadd.f32 %v50, %v220
  %v244 = vadd.f32 %v51, %v223
  %v245 = vadd.f32 %v52, %v225
  %v246 = vadd.f32 %v53, %v228
  %v247 = vadd.f32 %v54, %v230
  %248 = vst [vmem:[%s4] sm:$0xff] %v232
  %249 = vst [vmem:[%s4 + $0x8] sm:$0xff] %v233
  %250 = vst [vmem:[%s4 + $0x10] sm:$0xff] %v234
  %251 = vst [vmem:[%s4 + $0x18] sm:$0xff] %v235
  %252 = vst [vmem:[%s4 + $0x20] sm:$0xff] %v236
  %253 = vst [vmem:[%s4 + $0x28] sm:$0xff] %v237
  %254 = vst [vmem:[%s4 + $0x30] sm:$0xff] %v238
  %255 = vst [vmem:[%s4 + $0x38] sm:$0xff] %v239
  %256 = vst [vmem:[%s4 + $0x40] sm:$0xff] %v240
  %257 = vst [vmem:[%s4 + $0x48] sm:$0xff] %v241
  %258 = vst [vmem:[%s4 + $0x50] sm:$0xff] %v242
  %259 = vst [vmem:[%s4 + $0x58] sm:$0xff] %v243
  %260 = vst [vmem:[%s4 + $0x60] sm:$0xff] %v244
  %261 = vst [vmem:[%s4 + $0x68] sm:$0xff] %v245
  %262 = vst [vmem:[%s4 + $0x70] sm:$0xff] %v246
  %263 = vst [vmem:[%s4 + $0x78] sm:$0xff] %v247
  // Predicated region
  $region22: #{gin_forward.8} parent=0 // pred_check
    %p264 = pneg %p19
  $region23: #{gin_forward.8} parent=0 // pred_check_branch
    %266 = sbr.rel (%p264) target = $region25
  $region24: #{gin_forward.8} parent=0 // pred_region
    %v267 = vld [vmem:[%s4] sm:$0xff]
    %v268 = vld [vmem:[%s4 + $0x8] sm:$0xff]
    %v269 = vld [vmem:[%s4 + $0x10] sm:$0xff]
    %v270 = vld [vmem:[%s4 + $0x18] sm:$0xff]
    %v271 = vld [vmem:[%s4 + $0x20] sm:$0xff]
    %v272 = vld [vmem:[%s4 + $0x28] sm:$0xff]
    %v273 = vld [vmem:[%s4 + $0x30] sm:$0xff]
    %v274 = vld [vmem:[%s4 + $0x38] sm:$0xff]
    %v275 = vld [vmem:[%s4 + $0x40] sm:$0xff]
    %v276 = vld [vmem:[%s4 + $0x48] sm:$0xff]
    %v277 = vld [vmem:[%s4 + $0x50] sm:$0xff]
    %v278 = vld [vmem:[%s4 + $0x58] sm:$0xff]
    %v279 = vld [vmem:[%s4 + $0x60] sm:$0xff]
    %v280 = vld [vmem:[%s4 + $0x68] sm:$0xff]
    %v281 = vld [vmem:[%s4 + $0x70] sm:$0xff]
    %v282 = vld [vmem:[%s4 + $0x78] sm:$0xff]
    %v283 = vld [vmem:[%s2] sm:$0xff]
    %v284 = vld [vmem:[%s2 + $0x8] sm:$0xff]
    %v285 = vld [vmem:[%s2 + $0x10] sm:$0xff]
    %v286 = vld [vmem:[%s2 + $0x18] sm:$0xff]
    %v287 = vld [vmem:[%s2 + $0x20] sm:$0xff]
    %v288 = vld [vmem:[%s2 + $0x28] sm:$0xff]
    %v289 = vld [vmem:[%s2 + $0x30] sm:$0xff]
    %v290 = vld [vmem:[%s2 + $0x38] sm:$0xff]
    %v291 = vld [vmem:[%s2 + $0x40] sm:$0xff]
    %v292 = vld [vmem:[%s2 + $0x48] sm:$0xff]
    %v293 = vld [vmem:[%s2 + $0x50] sm:$0xff]
    %v294 = vld [vmem:[%s2 + $0x58] sm:$0xff]
    %v295 = vld [vmem:[%s2 + $0x60] sm:$0xff]
    %v296 = vld [vmem:[%s2 + $0x68] sm:$0xff]
    %v297 = vld [vmem:[%s2 + $0x70] sm:$0xff]
    %v298 = vld [vmem:[%s2 + $0x78] sm:$0xff]
    %v299 = vld [vmem:[%s3] sm:$0x1]
    %v300 = vperm.slane %v299, 0
    %301 = vmatpush.msra.mxu0 %v298
    %302 = vmatpush.msra.mxu0 %v297
    %303 = vmatpush.msra.mxu0 %v296
    %304 = vmatpush.msra.mxu0 %v295
    %305 = vmatpush.msra.mxu0 %v294
    %306 = vmatpush.msra.mxu0 %v293
    %307 = vmatpush.msra.mxu0 %v292
    %308 = vmatpush.msra.mxu0 %v291
    %309 = vmatpush.msra.mxu0 %v290
    %310 = vmatpush.msra.mxu0 %v289
    %311 = vmatpush.msra.mxu0 %v288
    %312 = vmatpush.msra.mxu0 %v287
    %313 = vmatpush.msra.mxu0 %v286
    %314 = vmatpush.msra.mxu0 %v285
    %315 = vmatpush.msra.mxu0 %v284
    %316 = vmatpush.msra.mxu0 %v283
    %317 = vmatmul.f32.gmra.mxu0 %v267
    %v318 = vpop.f32.mrf.mxu0
    %v319 = vadd.f32 %v300, %v318
    %320 = vmatmul.f32.gmra.mxu0 %v268
    %v321 = vpop.f32.mrf.mxu0
    %v322 = vadd.f32 %v300, %v321
    %323 = vmatmul.f32.gmra.mxu0 %v269
    %v324 = vpop.f32.mrf.mxu0
    %v325 = vadd.f32 %v300, %v324
    %326 = vmatmul.f32.gmra.mxu0 %v270
    %v327 = vpop.f32.mrf.mxu0
    %v328 = vadd.f32 %v300, %v327
    %329 = vmatmul.f32.gmra.mxu0 %v271
    %v330 = vpop.f32.mrf.mxu0
    %v331 = vadd.f32 %v300, %v330
    %332 = vmatmul.f32.gmra.mxu0 %v272
    %v333 = vpop.f32.mrf.mxu0
    %v334 = vadd.f32 %v300, %v333
    %335 = vmatmul.f32.gmra.mxu0 %v273
    %v336 = vpop.f32.mrf.mxu0
    %v337 = vadd.f32 %v300, %v336
    %338 = vmatmul.f32.gmra.mxu0 %v274
    %v339 = vpop.f32.mrf.mxu0
    %v340 = vadd.f32 %v300, %v339
    %341 = vmatmul.f32.gmra.mxu0 %v275
    %v342 = vpop.f32.mrf.mxu0
    %v343 = vadd.f32 %v300, %v342
    %344 = vmatmul.f32.gmra.mxu0 %v276
    %v345 = vpop.f32.mrf.mxu0
    %v346 = vadd.f32 %v300, %v345
    %347 = vmatmul.f32.gmra.mxu0 %v277
    %v348 = vpop.f32.mrf.mxu0
    %v349 = vadd.f32 %v300, %v348
    %350 = vmatmul.f32.gmra.mxu0 %v278
    %v351 = vpop.f32.mrf.mxu0
    %v352 = vadd.f32 %v300, %v351
    %353 = vmatmul.f32.gmra.mxu0 %v279
    %v354 = vpop.f32.mrf.mxu0
    %v355 = vadd.f32 %v300, %v354
    %356 = vmatmul.f32.gmra.mxu0 %v280
    %v357 = vpop.f32.mrf.mxu0
    %v358 = vadd.f32 %v300, %v357
    %359 = vmatmul.f32.gmra.mxu0 %v281
    %v360 = vpop.f32.mrf.mxu0
    %v361 = vadd.f32 %v300, %v360
    %362 = vmatmul.f32.gmra.mxu0 %v282
    %v363 = vpop.f32.mrf.mxu0
    %v364 = vadd.f32 %v300, %v363
    %365 = vdwg.mxu0
    %366 = vst [vmem:[%s4] sm:$0xff] %v319
    %367 = vst [vmem:[%s4 + $0x8] sm:$0xff] %v322
    %368 = vst [vmem:[%s4 + $0x10] sm:$0xff] %v325
    %369 = vst [vmem:[%s4 + $0x18] sm:$0xff] %v328
    %370 = vst [vmem:[%s4 + $0x20] sm:$0xff] %v331
    %371 = vst [vmem:[%s4 + $0x28] sm:$0xff] %v334
    %372 = vst [vmem:[%s4 + $0x30] sm:$0xff] %v337
    %373 = vst [vmem:[%s4 + $0x38] sm:$0xff] %v340
    %374 = vst [vmem:[%s4 + $0x40] sm:$0xff] %v343
    %375 = vst [vmem:[%s4 + $0x48] sm:$0xff] %v346
    %376 = vst [vmem:[%s4 + $0x50] sm:$0xff] %v349
    %377 = vst [vmem:[%s4 + $0x58] sm:$0xff] %v352
    %378 = vst [vmem:[%s4 + $0x60] sm:$0xff] %v355
    %379 = vst [vmem:[%s4 + $0x68] sm:$0xff] %v358
    %380 = vst [vmem:[%s4 + $0x70] sm:$0xff] %v361
    %381 = vst [vmem:[%s4 + $0x78] sm:$0xff] %v364
    %s382 = smul.u32 0, 128
    %v383 = vlaneseq
    %v384 = vshrl.u32 %v383, 7
    %v385 = vadd.s32 %v384, 8
    %v386 = vadd.s32 %v384, 16
    %v387 = vadd.s32 %v384, 24
    %v388 = vadd.s32 %v384, 32
    %v389 = vadd.s32 %v384, 40
    %v390 = vadd.s32 %v384, 48
    %v391 = vadd.s32 %v384, 56
    %v392 = vadd.s32 %v384, 64
    %v393 = vadd.s32 %v384, 72
    %v394 = vadd.s32 %v384, 80
    %v395 = vadd.s32 %v384, 88
    %v396 = vadd.s32 %v384, 96
    %v397 = vadd.s32 %v384, 104
    %v398 = vadd.s32 %v384, 112
    %v399 = vadd.s32 %v384, 120
    %v400 = vstv %s382
    %v401 = vadd.s32 %v400, %v384
    %v402 = vadd.s32 %v400, %v385
    %v403 = vadd.s32 %v400, %v386
    %v404 = vadd.s32 %v400, %v387
    %v405 = vadd.s32 %v400, %v388
    %v406 = vadd.s32 %v400, %v389
    %v407 = vadd.s32 %v400, %v390
    %v408 = vadd.s32 %v400, %v391
    %v409 = vadd.s32 %v400, %v392
    %v410 = vadd.s32 %v400, %v393
    %v411 = vadd.s32 %v400, %v394
    %v412 = vadd.s32 %v400, %v395
    %v413 = vadd.s32 %v400, %v396
    %v414 = vadd.s32 %v400, %v397
    %v415 = vadd.s32 %v400, %v398
    %v416 = vadd.s32 %v400, %v399
    %vm417 = vcmp.lt.s32.totalorder %v401, 16
    %vm418 = vcmp.lt.s32.totalorder %v402, 16
    %vm419 = vcmp.lt.s32.totalorder %v403, 16
    %vm420 = vcmp.lt.s32.totalorder %v404, 16
    %vm421 = vcmp.lt.s32.totalorder %v405, 16
    %vm422 = vcmp.lt.s32.totalorder %v406, 16
    %vm423 = vcmp.lt.s32.totalorder %v407, 16
    %vm424 = vcmp.lt.s32.totalorder %v408, 16
    %vm425 = vcmp.lt.s32.totalorder %v409, 16
    %vm426 = vcmp.lt.s32.totalorder %v410, 16
    %vm427 = vcmp.lt.s32.totalorder %v411, 16
    %vm428 = vcmp.lt.s32.totalorder %v412, 16
    %vm429 = vcmp.lt.s32.totalorder %v413, 16
    %vm430 = vcmp.lt.s32.totalorder %v414, 16
    %vm431 = vcmp.lt.s32.totalorder %v415, 16
    %vm432 = vcmp.lt.s32.totalorder %v416, 16
    %v433 = vsel %vm417, %v319, 0.0
    %v434 = vsel %vm418, %v322, 0.0
    %v435 = vsel %vm419, %v325, 0.0
    %v436 = vsel %vm420, %v328, 0.0
    %v437 = vsel %vm421, %v331, 0.0
    %v438 = vsel %vm422, %v334, 0.0
    %v439 = vsel %vm423, %v337, 0.0
    %v440 = vsel %vm424, %v340, 0.0
    %v441 = vsel %vm425, %v343, 0.0
    %v442 = vsel %vm426, %v346, 0.0
    %v443 = vsel %vm427, %v349, 0.0
    %v444 = vsel %vm428, %v352, 0.0
    %v445 = vsel %vm429, %v355, 0.0
    %v446 = vsel %vm430, %v358, 0.0
    %v447 = vsel %vm431, %v361, 0.0
    %v448 = vsel %vm432, %v364, 0.0
    %v449 = vadd.f32 %v433, %v434
    %v450 = vadd.f32 %v449, %v435
    %v451 = vadd.f32 %v450, %v436
    %v452 = vadd.f32 %v451, %v437
    %v453 = vadd.f32 %v452, %v438
    %v454 = vadd.f32 %v453, %v439
    %v455 = vadd.f32 %v454, %v440
    %v456 = vadd.f32 %v455, %v441
    %v457 = vadd.f32 %v456, %v442
    %v458 = vadd.f32 %v457, %v443
    %v459 = vadd.f32 %v458, %v444
    %v460 = vadd.f32 %v459, %v445
    %v461 = vadd.f32 %v460, %v446
    %v462 = vadd.f32 %v461, %v447
    %v463 = vadd.f32 %v462, %v448
    %v464 = vrot.slane %v463, 4
    %v465 = vadd.f32 %v463, %v464
    %v466 = vrot.slane %v465, 2
    %v467 = vadd.f32 %v465, %v466
    %v468 = vrot.slane %v467, 1
    %v469 = vadd.f32 %v467, %v468
    %470 = vst [vmem:[%s5] sm:$0x1] %v469
    %v471 = vmul.f32 %v433, %v433
    %v472 = vmul.f32 %v434, %v434
    %v473 = vmul.f32 %v435, %v435
    %v474 = vmul.f32 %v436, %v436
    %v475 = vmul.f32 %v437, %v437
    %v476 = vmul.f32 %v438, %v438
    %v477 = vmul.f32 %v439, %v439
    %v478 = vmul.f32 %v440, %v440
    %v479 = vmul.f32 %v441, %v441
    %v480 = vmul.f32 %v442, %v442
    %v481 = vmul.f32 %v443, %v443
    %v482 = vmul.f32 %v444, %v444
    %v483 = vmul.f32 %v445, %v445
    %v484 = vmul.f32 %v446, %v446
    %v485 = vmul.f32 %v447, %v447
    %v486 = vmul.f32 %v448, %v448
    %v487 = vadd.f32 %v471, %v472
    %v488 = vadd.f32 %v487, %v473
    %v489 = vadd.f32 %v488, %v474
    %v490 = vadd.f32 %v489, %v475
    %v491 = vadd.f32 %v490, %v476
    %v492 = vadd.f32 %v491, %v477
    %v493 = vadd.f32 %v492, %v478
    %v494 = vadd.f32 %v493, %v479
    %v495 = vadd.f32 %v494, %v480
    %v496 = vadd.f32 %v495, %v481
    %v497 = vadd.f32 %v496, %v482
    %v498 = vadd.f32 %v497, %v483
    %v499 = vadd.f32 %v498, %v484
    %v500 = vadd.f32 %v499, %v485
    %v501 = vadd.f32 %v500, %v486
    %v502 = vrot.slane %v501, 4
    %v503 = vadd.f32 %v501, %v502
    %v504 = vrot.slane %v503, 2
    %v505 = vadd.f32 %v503, %v504
    %v506 = vrot.slane %v505, 1
    %v507 = vadd.f32 %v505, %v506
    %508 = vst [vmem:[%s5 + $0x1] sm:$0x1] %v507
  $region25: #{gin_forward.8} parent=0 // pred_fallthru
    _
  // Predicated region
  $region26: #{gin_forward.8} parent=0 // pred_check
    _
  $region27: #{gin_forward.8} parent=0 // pred_check_branch
    %510 = sbr.rel (0) target = $region29
  $region28: #{gin_forward.8} parent=0 // pred_region
    _
  $region29: #{gin_forward.8} parent=0 // pred_fallthru
    _
  // Predicated region
  $region30: #{gin_forward.8} parent=0 // pred_check
    _
  $region31: #{gin_forward.8} parent=0 // pred_check_branch
    %512 = sbr.rel (0) target = $region33
  $region32: #{gin_forward.8} parent=0 // pred_region
    _
  $region33: #{gin_forward.8} parent=0 // pred_fallthru
    _
  // Predicated region
  $region34: #{gin_forward.8} parent=0 // pred_check
    _
  $region35: #{gin_forward.8} parent=0 // pred_check_branch
    %514 = sbr.rel (0) target = $region37
  $region36: #{gin_forward.8} parent=0 // pred_region
    _
  $region37: #{gin_forward.8} parent=0 // pred_fallthru
    _
  // Predicated region
  $region38: #{gin_forward.8} parent=0 // pred_check
    _
  $region39: #{gin_forward.8} parent=0 // pred_check_branch
    %516 = sbr.rel (0) target = $region41
  $region40: #{gin_forward.8} parent=0 // pred_region
    _
  $region41: #{gin_forward.8} parent=0 // pred_fallthru
    _

// kernel: gin_forward.11
$region0: #{gin_forward.11}
  #allocation0 [shape = 'u32[]', space=smem, size = 0x4, offset = 0x4, fixed_abs, tag = 'smem constant byte address 0x4 - core index']
  #allocation1 [shape = 'u32[72,128]{1,0:T(1,128)}', space=vmem, size = 0x9000, scoped, tag = 'internal scratch']
  %s0 = inlined_call_operand.vmem [shape: f32[128,128], index: 0, kind: input, shape index: {}]
  %s1 = inlined_call_operand.vmem [shape: f32[2,128], index: 1, kind: input, shape index: {}]
  %s2 = inlined_call_operand.vmem [shape: f32[2,128,128], index: 2, kind: input, shape index: {}]
  %s3 = inlined_call_operand.vmem [shape: f32[16,128], index: 3, kind: input, shape index: {}]
  %s4 = inlined_call_operand.vmem [shape: f32[8,128], index: 4, kind: output, shape index: {}]
  %s5 = sld [smem:[#allocation0]]
  $region26: #{gin_forward.11} parent=0
    _
  %s7 = ssub.s32 1, %s5
  %s8 = scalar_select 0, %s7, %s5
  // Predicated region
  $region2: #{gin_forward.11} parent=0 // pred_check
    _
  $region3: #{gin_forward.11} parent=0 // pred_check_branch
    %10 = sbr.rel (0) target = $region5
  $region4: #{gin_forward.11} parent=0 // pred_region
    _
  $region5: #{gin_forward.11} parent=0 // pred_fallthru
    _
  // Predicated region
  $region6: #{gin_forward.11} parent=0 // pred_check
    _
  $region7: #{gin_forward.11} parent=0 // pred_check_branch
    %12 = sbr.rel (0) target = $region9
  $region8: #{gin_forward.11} parent=0 // pred_region
    _
  $region9: #{gin_forward.11} parent=0 // pred_fallthru
    _
  // Predicated region
  $region10: #{gin_forward.11} parent=0 // pred_check
    _
  $region11: #{gin_forward.11} parent=0 // pred_check_branch
    %14 = sbr.rel (0) target = $region13
  $region12: #{gin_forward.11} parent=0 // pred_region
    _
  $region13: #{gin_forward.11} parent=0 // pred_fallthru
    _
  // Predicated region
  $region14: #{gin_forward.11} parent=0 // pred_check
    _
  $region15: #{gin_forward.11} parent=0 // pred_check_branch
    %16 = sbr.rel (0) target = $region17
  $region16: #{gin_forward.11} parent=0 // pred_region
    _
  $region17: #{gin_forward.11} parent=0 // pred_fallthru
    _
  %v17 = vld [vmem:[%s0] sm:$0xff]
  %v18 = vld [vmem:[%s0 + $0x8] sm:$0xff]
  %v19 = vld [vmem:[%s0 + $0x10] sm:$0xff]
  %v20 = vld [vmem:[%s0 + $0x18] sm:$0xff]
  %v21 = vld [vmem:[%s0 + $0x20] sm:$0xff]
  %v22 = vld [vmem:[%s0 + $0x28] sm:$0xff]
  %v23 = vld [vmem:[%s0 + $0x30] sm:$0xff]
  %v24 = vld [vmem:[%s0 + $0x38] sm:$0xff]
  %v25 = vld [vmem:[%s0 + $0x40] sm:$0xff]
  %v26 = vld [vmem:[%s0 + $0x48] sm:$0xff]
  %v27 = vld [vmem:[%s0 + $0x50] sm:$0xff]
  %v28 = vld [vmem:[%s0 + $0x58] sm:$0xff]
  %v29 = vld [vmem:[%s0 + $0x60] sm:$0xff]
  %v30 = vld [vmem:[%s0 + $0x68] sm:$0xff]
  %v31 = vld [vmem:[%s0 + $0x70] sm:$0xff]
  %v32 = vld [vmem:[%s0 + $0x78] sm:$0xff]
  %v33 = vld [vmem:[%s1] sm:$0x1]
  %v34 = vmul.f32 %v33, 0.0625
  %v35 = vld [vmem:[%s1 + $0x1] sm:$0x1]
  %v36 = vmul.f32 %v35, 0.0625
  %v37 = vmul.f32 %v34, %v34
  %v38 = vsub.f32 %v36, %v37
  %v39 = vld [vmem:[%s3] sm:$0x1]
  %v40 = vadd.f32 %v38, 1e-05
  %v41 = vrsqrt.pop %v40
  %v42 = vmul.f32 %v41, %v40
  %v43 = vmul.f32 %v42, %v41
  %v44 = vmul.f32 0.5, %v43
  %v45 = vsub.f32 1.5, %v44
  %v46 = vmul.f32 %v41, %v45
  %vm47 = vweird.f32 %v40
  %vm48 = vweird.f32 %v41
  %vm49 = vmor %vm47, %vm48
  %v50 = vsel %vm49, %v41, %v46
  %v51 = vmul.f32 %v39, %v50
  %v52 = vld [vmem:[%s3 + $0x1] sm:$0x1]
  %v53 = vmul.f32 %v34, %v51
  %v54 = vsub.f32 %v52, %v53
  %v55 = vperm.slane %v51, 0
  %v56 = vmul.f32 %v17, %v55
  %v57 = vmul.f32 %v18, %v55
  %v58 = vmul.f32 %v19, %v55
  %v59 = vmul.f32 %v20, %v55
  %v60 = vmul.f32 %v21, %v55
  %v61 = vmul.f32 %v22, %v55
  %v62 = vmul.f32 %v23, %v55
  %v63 = vmul.f32 %v24, %v55
  %v64 = vmul.f32 %v25, %v55
  %v65 = vmul.f32 %v26, %v55
  %v66 = vmul.f32 %v27, %v55
  %v67 = vmul.f32 %v28, %v55
  %v68 = vmul.f32 %v29, %v55
  %v69 = vmul.f32 %v30, %v55
  %v70 = vmul.f32 %v31, %v55
  %v71 = vmul.f32 %v32, %v55
  %v72 = vperm.slane %v54, 0
  %v73 = vadd.f32 %v56, %v72
  %v74 = vadd.f32 %v57, %v72
  %v75 = vadd.f32 %v58, %v72
  %v76 = vadd.f32 %v59, %v72
  %v77 = vadd.f32 %v60, %v72
  %v78 = vadd.f32 %v61, %v72
  %v79 = vadd.f32 %v62, %v72
  %v80 = vadd.f32 %v63, %v72
  %v81 = vadd.f32 %v64, %v72
  %v82 = vadd.f32 %v65, %v72
  %v83 = vadd.f32 %v66, %v72
  %v84 = vadd.f32 %v67, %v72
  %v85 = vadd.f32 %v68, %v72
  %v86 = vadd.f32 %v69, %v72
  %v87 = vadd.f32 %v70, %v72
  %v88 = vadd.f32 %v71, %v72
  %v89 = vmax.f32 %v73, 0.0
  %v90 = vmax.f32 %v74, 0.0
  %v91 = vmax.f32 %v75, 0.0
  %v92 = vmax.f32 %v76, 0.0
  %v93 = vmax.f32 %v77, 0.0
  %v94 = vmax.f32 %v78, 0.0
  %v95 = vmax.f32 %v79, 0.0
  %v96 = vmax.f32 %v80, 0.0
  %v97 = vmax.f32 %v81, 0.0
  %v98 = vmax.f32 %v82, 0.0
  %v99 = vmax.f32 %v83, 0.0
  %v100 = vmax.f32 %v84, 0.0
  %v101 = vmax.f32 %v85, 0.0
  %v102 = vmax.f32 %v86, 0.0
  %v103 = vmax.f32 %v87, 0.0
  %v104 = vmax.f32 %v88, 0.0
  %v105 = vld [vmem:[%s2] sm:$0xff]
  %v106 = vld [vmem:[%s2 + $0x8] sm:$0xff]
  %v107 = vld [vmem:[%s2 + $0x10] sm:$0xff]
  %v108 = vld [vmem:[%s2 + $0x18] sm:$0xff]
  %v109 = vld [vmem:[%s2 + $0x20] sm:$0xff]
  %v110 = vld [vmem:[%s2 + $0x28] sm:$0xff]
  %v111 = vld [vmem:[%s2 + $0x30] sm:$0xff]
  %v112 = vld [vmem:[%s2 + $0x38] sm:$0xff]
  %v113 = vld [vmem:[%s2 + $0x40] sm:$0xff]
  %v114 = vld [vmem:[%s2 + $0x48] sm:$0xff]
  %v115 = vld [vmem:[%s2 + $0x50] sm:$0xff]
  %v116 = vld [vmem:[%s2 + $0x58] sm:$0xff]
  %v117 = vld [vmem:[%s2 + $0x60] sm:$0xff]
  %v118 = vld [vmem:[%s2 + $0x68] sm:$0xff]
  %v119 = vld [vmem:[%s2 + $0x70] sm:$0xff]
  %v120 = vld [vmem:[%s2 + $0x78] sm:$0xff]
  %v121 = vld [vmem:[%s3 + $0x2] sm:$0x1]
  %v122 = vperm.slane %v121, 0
  %123 = vmatpush.msra.mxu0 %v120
  %124 = vmatpush.msra.mxu0 %v119
  %125 = vmatpush.msra.mxu0 %v118
  %126 = vmatpush.msra.mxu0 %v117
  %127 = vmatpush.msra.mxu0 %v116
  %128 = vmatpush.msra.mxu0 %v115
  %129 = vmatpush.msra.mxu0 %v114
  %130 = vmatpush.msra.mxu0 %v113
  %131 = vmatpush.msra.mxu0 %v112
  %132 = vmatpush.msra.mxu0 %v111
  %133 = vmatpush.msra.mxu0 %v110
  %134 = vmatpush.msra.mxu0 %v109
  %135 = vmatpush.msra.mxu0 %v108
  %136 = vmatpush.msra.mxu0 %v107
  %137 = vmatpush.msra.mxu0 %v106
  %138 = vmatpush.msra.mxu0 %v105
  %139 = vmatmul.f32.gmra.mxu0 %v89
  %v140 = vpop.f32.mrf.mxu0
  %v141 = vadd.f32 %v122, %v140
  %142 = vmatmul.f32.gmra.mxu0 %v90
  %v143 = vpop.f32.mrf.mxu0
  %v144 = vadd.f32 %v122, %v143
  %145 = vmatmul.f32.gmra.mxu0 %v91
  %v146 = vpop.f32.mrf.mxu0
  %v147 = vadd.f32 %v122, %v146
  %148 = vmatmul.f32.gmra.mxu0 %v92
  %v149 = vpop.f32.mrf.mxu0
  %v150 = vadd.f32 %v122, %v149
  %151 = vmatmul.f32.gmra.mxu0 %v93
  %v152 = vpop.f32.mrf.mxu0
  %v153 = vadd.f32 %v122, %v152
  %154 = vmatmul.f32.gmra.mxu0 %v94
  %v155 = vpop.f32.mrf.mxu0
  %v156 = vadd.f32 %v122, %v155
  %157 = vmatmul.f32.gmra.mxu0 %v95
  %v158 = vpop.f32.mrf.mxu0
  %v159 = vadd.f32 %v122, %v158
  %160 = vmatmul.f32.gmra.mxu0 %v96
  %v161 = vpop.f32.mrf.mxu0
  %v162 = vadd.f32 %v122, %v161
  %163 = vmatmul.f32.gmra.mxu0 %v97
  %v164 = vpop.f32.mrf.mxu0
  %v165 = vadd.f32 %v122, %v164
  %166 = vmatmul.f32.gmra.mxu0 %v98
  %v167 = vpop.f32.mrf.mxu0
  %v168 = vadd.f32 %v122, %v167
  %169 = vmatmul.f32.gmra.mxu0 %v99
  %v170 = vpop.f32.mrf.mxu0
  %v171 = vadd.f32 %v122, %v170
  %172 = vmatmul.f32.gmra.mxu0 %v100
  %v173 = vpop.f32.mrf.mxu0
  %v174 = vadd.f32 %v122, %v173
  %175 = vmatmul.f32.gmra.mxu0 %v101
  %v176 = vpop.f32.mrf.mxu0
  %v177 = vadd.f32 %v122, %v176
  %178 = vmatmul.f32.gmra.mxu0 %v102
  %v179 = vpop.f32.mrf.mxu0
  %v180 = vadd.f32 %v122, %v179
  %181 = vmatmul.f32.gmra.mxu0 %v103
  %v182 = vpop.f32.mrf.mxu0
  %v183 = vadd.f32 %v122, %v182
  %184 = vmatmul.f32.gmra.mxu0 %v104
  %v185 = vpop.f32.mrf.mxu0
  %v186 = vadd.f32 %v122, %v185
  %187 = vdwg.mxu0
  %v188 = vmax.f32 %v141, 0.0
  %v189 = vmax.f32 %v144, 0.0
  %v190 = vmax.f32 %v147, 0.0
  %v191 = vmax.f32 %v150, 0.0
  %v192 = vmax.f32 %v153, 0.0
  %v193 = vmax.f32 %v156, 0.0
  %v194 = vmax.f32 %v159, 0.0
  %v195 = vmax.f32 %v162, 0.0
  %v196 = vmax.f32 %v165, 0.0
  %v197 = vmax.f32 %v168, 0.0
  %v198 = vmax.f32 %v171, 0.0
  %v199 = vmax.f32 %v174, 0.0
  %v200 = vmax.f32 %v177, 0.0
  %v201 = vmax.f32 %v180, 0.0
  %v202 = vmax.f32 %v183, 0.0
  %v203 = vmax.f32 %v186, 0.0
  %s204 = scalar_lea.vmem %s2, 128
  %v205 = vld [vmem:[%s204] sm:$0xff]
  %v206 = vld [vmem:[%s204 + $0x8] sm:$0xff]
  %v207 = vld [vmem:[%s204 + $0x10] sm:$0xff]
  %v208 = vld [vmem:[%s204 + $0x18] sm:$0xff]
  %v209 = vld [vmem:[%s204 + $0x20] sm:$0xff]
  %v210 = vld [vmem:[%s204 + $0x28] sm:$0xff]
  %v211 = vld [vmem:[%s204 + $0x30] sm:$0xff]
  %v212 = vld [vmem:[%s204 + $0x38] sm:$0xff]
  %v213 = vld [vmem:[%s204 + $0x40] sm:$0xff]
  %v214 = vld [vmem:[%s204 + $0x48] sm:$0xff]
  %v215 = vld [vmem:[%s204 + $0x50] sm:$0xff]
  %v216 = vld [vmem:[%s204 + $0x58] sm:$0xff]
  %v217 = vld [vmem:[%s204 + $0x60] sm:$0xff]
  %v218 = vld [vmem:[%s204 + $0x68] sm:$0xff]
  %v219 = vld [vmem:[%s204 + $0x70] sm:$0xff]
  %v220 = vld [vmem:[%s204 + $0x78] sm:$0xff]
  %v221 = vld [vmem:[%s3 + $0x3] sm:$0x1]
  %v222 = vperm.slane %v221, 0
  %223 = vmatpush.msra.mxu0 %v220
  %224 = vmatpush.msra.mxu0 %v219
  %225 = vmatpush.msra.mxu0 %v218
  %226 = vmatpush.msra.mxu0 %v217
  %227 = vmatpush.msra.mxu0 %v216
  %228 = vmatpush.msra.mxu0 %v215
  %229 = vmatpush.msra.mxu0 %v214
  %230 = vmatpush.msra.mxu0 %v213
  %231 = vmatpush.msra.mxu0 %v212
  %232 = vmatpush.msra.mxu0 %v211
  %233 = vmatpush.msra.mxu0 %v210
  %234 = vmatpush.msra.mxu0 %v209
  %235 = vmatpush.msra.mxu0 %v208
  %236 = vmatpush.msra.mxu0 %v207
  %237 = vmatpush.msra.mxu0 %v206
  %238 = vmatpush.msra.mxu0 %v205
  %239 = vmatmul.f32.gmra.mxu0 %v188
  %v240 = vpop.f32.mrf.mxu0
  %v241 = vadd.f32 %v222, %v240
  %242 = vmatmul.f32.gmra.mxu0 %v189
  %v243 = vpop.f32.mrf.mxu0
  %v244 = vadd.f32 %v222, %v243
  %245 = vmatmul.f32.gmra.mxu0 %v190
  %v246 = vpop.f32.mrf.mxu0
  %v247 = vadd.f32 %v222, %v246
  %248 = vmatmul.f32.gmra.mxu0 %v191
  %v249 = vpop.f32.mrf.mxu0
  %v250 = vadd.f32 %v222, %v249
  %251 = vmatmul.f32.gmra.mxu0 %v192
  %v252 = vpop.f32.mrf.mxu0
  %v253 = vadd.f32 %v222, %v252
  %254 = vmatmul.f32.gmra.mxu0 %v193
  %v255 = vpop.f32.mrf.mxu0
  %v256 = vadd.f32 %v222, %v255
  %257 = vmatmul.f32.gmra.mxu0 %v194
  %v258 = vpop.f32.mrf.mxu0
  %v259 = vadd.f32 %v222, %v258
  %260 = vmatmul.f32.gmra.mxu0 %v195
  %v261 = vpop.f32.mrf.mxu0
  %v262 = vadd.f32 %v222, %v261
  %263 = vmatmul.f32.gmra.mxu0 %v196
  %v264 = vpop.f32.mrf.mxu0
  %v265 = vadd.f32 %v222, %v264
  %266 = vmatmul.f32.gmra.mxu0 %v197
  %v267 = vpop.f32.mrf.mxu0
  %v268 = vadd.f32 %v222, %v267
  %269 = vmatmul.f32.gmra.mxu0 %v198
  %v270 = vpop.f32.mrf.mxu0
  %v271 = vadd.f32 %v222, %v270
  %272 = vmatmul.f32.gmra.mxu0 %v199
  %v273 = vpop.f32.mrf.mxu0
  %v274 = vadd.f32 %v222, %v273
  %275 = vmatmul.f32.gmra.mxu0 %v200
  %v276 = vpop.f32.mrf.mxu0
  %v277 = vadd.f32 %v222, %v276
  %278 = vmatmul.f32.gmra.mxu0 %v201
  %v279 = vpop.f32.mrf.mxu0
  %v280 = vadd.f32 %v222, %v279
  %281 = vmatmul.f32.gmra.mxu0 %v202
  %v282 = vpop.f32.mrf.mxu0
  %v283 = vadd.f32 %v222, %v282
  %284 = vmatmul.f32.gmra.mxu0 %v203
  %v285 = vpop.f32.mrf.mxu0
  %v286 = vadd.f32 %v222, %v285
  %287 = vdwg.mxu0
  %v288 = vmax.f32 %v241, 0.0
  %v289 = vmax.f32 %v244, 0.0
  %v290 = vmax.f32 %v247, 0.0
  %v291 = vmax.f32 %v250, 0.0
  %v292 = vmax.f32 %v253, 0.0
  %v293 = vmax.f32 %v256, 0.0
  %v294 = vmax.f32 %v259, 0.0
  %v295 = vmax.f32 %v262, 0.0
  %v296 = vmax.f32 %v265, 0.0
  %v297 = vmax.f32 %v268, 0.0
  %v298 = vmax.f32 %v271, 0.0
  %v299 = vmax.f32 %v274, 0.0
  %v300 = vmax.f32 %v277, 0.0
  %v301 = vmax.f32 %v280, 0.0
  %v302 = vmax.f32 %v283, 0.0
  %v303 = vmax.f32 %v286, 0.0
  %v304 = vld [vmem:[%s3 + $0x8] sm:$0xff]
  %v305 = vld [vmem:[%s3 + $0x4] sm:$0x1]
  %s307 = vtos %v305
  %v308 = vstv %s307
  %310 = vmatpush.xpose.msra.mxu0 %v303
  %311 = vmatpush.xpose.msra.mxu0 %v302
  %312 = vmatpush.xpose.msra.mxu0 %v301
  %313 = vmatpush.xpose.msra.mxu0 %v300
  %314 = vmatpush.xpose.msra.mxu0 %v299
  %315 = vmatpush.xpose.msra.mxu0 %v298
  %316 = vmatpush.xpose.msra.mxu0 %v297
  %317 = vmatpush.xpose.msra.mxu0 %v296
  %318 = vmatpush.xpose.msra.mxu0 %v295
  %319 = vmatpush.xpose.msra.mxu0 %v294
  %320 = vmatpush.xpose.msra.mxu0 %v293
  %321 = vmatpush.xpose.msra.mxu0 %v292
  %322 = vmatpush.xpose.msra.mxu0 %v291
  %323 = vmatpush.xpose.msra.mxu0 %v290
  %324 = vmatpush.xpose.msra.mxu0 %v289
  %325 = vmatpush.xpose.msra.mxu0 %v288
  %326 = vmatmul.f32.gmra.mxu0 %v304
  %v327 = vpop.f32.mrf.mxu0
  %v328 = vadd.f32 %v308, %v327
  %329 = vdwg.mxu0
  %330 = vst [vmem:[%s4] sm:$0xff] %v328
  // Predicated region
  $region18: #{gin_forward.11} parent=0 // pred_check
    _
  $region19: #{gin_forward.11} parent=0 // pred_check_branch
    %332 = sbr.rel (0) target = $region21
  $region20: #{gin_forward.11} parent=0 // pred_region
    _
  $region21: #{gin_forward.11} parent=0 // pred_fallthru
    _
  // Predicated region
  $region22: #{gin_forward.11} parent=0 // pred_check
    _
  $region23: #{gin_forward.11} parent=0 // pred_check_branch
    %334 = sbr.rel (0) target = $region25
  $region24: #{gin_forward.11} parent=0 // pred_region
    _
  $region25: #{gin_forward.11} parent=0 // pred_fallthru
    _

</llo_original>
